<compile_context>
chip_gen: v6e
topology: v6e:2x2x1
jax: 0.10.0
libtpu: 0.0.40
codegen_flags: <defaults>
</compile_context>

<pallas_src>
import functools

import jax
import jax.numpy as jnp
from jax.experimental import pallas as pl
from jax.experimental.pallas import tpu as pltpu

VMEM = pltpu.MemorySpace.VMEM


# ------------------- fused backbone feature extractor (both streams) -------------------
def _feat_kernel(inv_hw, f1_chunk, x_ref, w1_ref, b1_ref, w2_ref, b2_ref, o_ref, acc_ref):
    # x_ref : (C, bn, bhw) bf16  -- channel is a MAJOR dim; each (bn, bhw) slice lane-dense
    # w1_ref: (F1, C) f32 | b1_ref: (F1, 1) f32 | w2_ref: (F1, D) bf16 | b2_ref: (1, D) f32
    # o_ref : (bn, D) bf16 | acc_ref: (bn, F1) f32 post-ReLU spatial-sum accumulator
    j = pl.program_id(2)

    @pl.when(j == 0)
    def _():
        acc_ref[...] = jnp.zeros_like(acc_ref)

    c_dim, bn, bhw = x_ref.shape
    f1 = w1_ref.shape[0]
    xc = [x_ref[c].astype(jnp.float32) for c in range(c_dim)]      # C x (bn, bhw) f32

    # Pointwise conv + ReLU + spatial partial-sum, chunked over F1 so the live f32
    # intermediate stays at (bn, f1_chunk, bhw) <= ~32 vregs (no spill).
    sums = []
    for f0 in range(0, f1, f1_chunk):
        fc = min(f1_chunk, f1 - f0)
        h = jnp.zeros((bn, fc, bhw), jnp.float32) + b1_ref[f0:f0 + fc, :][None, :, :]
        for c in range(c_dim):                                     # static, C is tiny (3)
            h = h + xc[c][:, None, :] * w1_ref[f0:f0 + fc, c:c + 1][None, :, :]
        h = jnp.maximum(h, 0.0)                                    # ReLU before GAP
        sums.append(jnp.sum(h, axis=2))                            # (bn, fc) partial sum
    acc_ref[...] += jnp.concatenate(sums, axis=1)

    @pl.when(j == pl.num_programs(2) - 1)
    def _():
        g = acc_ref[...] * inv_hw                                  # global average pool
        f = jnp.dot(g.astype(jnp.bfloat16), w2_ref[...],
                    preferred_element_type=jnp.float32) + b2_ref[...]
        o_ref[...] = jnp.maximum(f, 0.0).astype(o_ref.dtype)


def backbone_features(rgb_img, thermal_img, w1_all, b1_all, w2_all, b2_all,
                      *, block_hw=512, f1_chunk=8):
    """Placeholder CNN backbone for BOTH streams: pointwise conv + ReLU + GAP + FC + ReLU.

    Returns (2, Np, D) bf16 features (stream 0 = rgb, 1 = thermal); Np = N padded to mult of 8.
    """
    n, c, hh, ww = rgb_img.shape
    hw = hh * ww
    n_pad = ((n + 7) // 8) * 8
    bn = 8                                        # never fall back to bn = N
    bhw = block_hw if hw % block_hw == 0 else hw  # TODO(synk): pad HW for odd spatial sizes

    def prep(img):
        x = jnp.transpose(img.reshape(n, c, hw), (1, 0, 2)).astype(jnp.bfloat16)  # (C,N,HW)
        if n_pad != n:
            x = jnp.pad(x, ((0, 0), (0, n_pad - n), (0, 0)))
        return x

    x_all = jnp.stack([prep(rgb_img), prep(thermal_img)], axis=0)  # (2, C, Np, HW) bf16
    f1 = w1_all.shape[1]
    d = w2_all.shape[2]
    grid = (2, n_pad // bn, hw // bhw)

    return pl.pallas_call(
        functools.partial(_feat_kernel, 1.0 / float(hw), f1_chunk),
        out_shape=jax.ShapeDtypeStruct((2, n_pad, d), jnp.bfloat16),
        grid_spec=pltpu.PrefetchScalarGridSpec(
            num_scalar_prefetch=0,
            grid=grid,
            in_specs=[
                pl.BlockSpec((None, c, bn, bhw), lambda s, i, j: (s, 0, i, j)),
                pl.BlockSpec((None, f1, c), lambda s, i, j: (s, 0, 0)),
                pl.BlockSpec((None, f1, 1), lambda s, i, j: (s, 0, 0)),
                pl.BlockSpec((None, f1, d), lambda s, i, j: (s, 0, 0)),
                pl.BlockSpec((None, 1, d), lambda s, i, j: (s, 0, 0)),
            ],
            out_specs=pl.BlockSpec((None, bn, d), lambda s, i, j: (s, i, 0)),
            scratch_shapes=[pltpu.VMEM((bn, f1), jnp.float32)],
        ),
        compiler_params=pltpu.CompilerParams(
            dimension_semantics=("parallel", "parallel", "arbitrary"),
            vmem_limit_bytes=32 * 1024 * 1024,
        ),
    )(x_all, w1_all, b1_all, w2_all, b2_all)


# ------------------------ layer-1 LSTM: hoisted input projection ----------------------
def _proj_kernel(x_ref, w_ref, b_ref, o_ref):
    # x_ref: (M, tk) bf16 | w_ref: (tk, tn) bf16 | b_ref: (1, tn) f32 | o_ref: (M, tn) f32
    # o_ref's block index is independent of k -> it stays VMEM-resident across the
    # reduction axis and is used directly as the accumulator (no scratch).
    k = pl.program_id(2)

    @pl.when(k == 0)
    def _():
        o_ref[...] = jnp.zeros_like(o_ref) + b_ref[...]

    o_ref[...] += jnp.dot(x_ref[...], w_ref[...], preferred_element_type=jnp.float32)


def input_projection(x_all, w_all, b_all, *, block_n=1024, block_k=2048):
    """gates = x @ [Wih_f | Wih_b] + b for both streams. x_all: (2, M, D) bf16 -> (2, M, 8H) f32."""
    s, m, k = x_all.shape
    n = w_all.shape[2]
    tn = block_n if (n % block_n == 0 and n >= block_n) else n
    tk = block_k if (k % block_k == 0 and k >= block_k) else k
    grid = (s, n // tn, k // tk)

    return pl.pallas_call(
        _proj_kernel,
        out_shape=jax.ShapeDtypeStruct((s, m, n), jnp.float32),
        grid_spec=pltpu.PrefetchScalarGridSpec(
            num_scalar_prefetch=0,
            grid=grid,
            in_specs=[
                pl.BlockSpec((None, m, tk), lambda si, ni, ki: (si, 0, ki)),
                pl.BlockSpec((None, tk, tn), lambda si, ni, ki: (si, ki, ni)),
                pl.BlockSpec((None, 1, tn), lambda si, ni, ki: (si, 0, ni)),
            ],
            out_specs=pl.BlockSpec((None, m, tn), lambda si, ni, ki: (si, 0, ni)),
        ),
        compiler_params=pltpu.CompilerParams(
            dimension_semantics=("parallel", "parallel", "arbitrary"),
            vmem_limit_bytes=32 * 1024 * 1024,
        ),
    )(x_all, w_all, b_all)


# -------------- layer-1 LSTM: fused recurrent kernel (directions interleaved) ----------
def _lstm_rec_kernel(gates_ref, whh_ref, out_ref):
    # One grid point = one stream; forward/backward chains interleaved per time step.
    # gates_ref: (T, Bp, 8H) f32 precomputed x@[Wih_f|Wih_b]+b
    # whh_ref  : (2, H, 4H) bf16 (dir 0 = fwd, 1 = bwd)
    # out_ref  : (T, Bp, 2H) bf16 bidirectional sequence output
    t_len, bp, _ = gates_ref.shape
    h = whh_ref.shape[1]
    four_h = 4 * h
    whh_f = whh_ref[0]
    whh_b = whh_ref[1]

    h_f = jnp.zeros((bp, h), jnp.float32)
    c_f = jnp.zeros((bp, h), jnp.float32)
    h_b = jnp.zeros((bp, h), jnp.float32)
    c_b = jnp.zeros((bp, h), jnp.float32)

    # Static unrolled time loop: both matmuls issued back-to-back (MXU) and all gate
    # nonlinearities evaluated on one stacked (2*Bp, 4H) block (amortized EUP/VPU);
    # all gate/out addresses are static.
    for t in range(t_len):
        tb = t_len - 1 - t
        g_f = gates_ref[t, :, 0:four_h] + jnp.dot(
            h_f.astype(jnp.bfloat16), whh_f, preferred_element_type=jnp.float32)
        g_b = gates_ref[tb, :, four_h:2 * four_h] + jnp.dot(
            h_b.astype(jnp.bfloat16), whh_b, preferred_element_type=jnp.float32)
        g = jnp.concatenate([g_f, g_b], axis=0)                    # (2*Bp, 4H)
        i = jax.nn.sigmoid(g[:, 0 * h:1 * h])                      # PyTorch order i,f,g,o
        f = jax.nn.sigmoid(g[:, 1 * h:2 * h])
        gg = jnp.tanh(g[:, 2 * h:3 * h])
        o = jax.nn.sigmoid(g[:, 3 * h:4 * h])
        c_new = f * jnp.concatenate([c_f, c_b], axis=0) + i * gg
        h_new = o * jnp.tanh(c_new)
        h_f, h_b = h_new[:bp], h_new[bp:]
        c_f, c_b = c_new[:bp], c_new[bp:]
        out_ref[t, :, 0:h] = h_f.astype(out_ref.dtype)             # fwd h_t at time t
        out_ref[tb, :, h:2 * h] = h_b.astype(out_ref.dtype)        # bwd h at original time tb


def lstm_layer1(gates, whh_all):
    """gates: (2, T, Bp, 8H) f32, whh_all: (2, 2, H, 4H) bf16 -> seq (2, T, Bp, 2H) bf16."""
    _, t_len, bp, eight_h = gates.shape
    h = whh_all.shape[2]
    return pl.pallas_call(
        _lstm_rec_kernel,
        out_shape=jax.ShapeDtypeStruct((2, t_len, bp, 2 * h), jnp.bfloat16),
        grid_spec=pltpu.PrefetchScalarGridSpec(
            num_scalar_prefetch=0,
            grid=(2,),                                             # stream -> one per TC on v7x
            in_specs=[
                pl.BlockSpec((None, t_len, bp, eight_h), lambda s: (s, 0, 0, 0)),
                pl.BlockSpec((None, 2, h, 4 * h), lambda s: (s, 0, 0, 0)),
            ],
            out_specs=pl.BlockSpec((None, t_len, bp, 2 * h), lambda s: (s, 0, 0, 0)),
        ),
        compiler_params=pltpu.CompilerParams(
            dimension_semantics=("parallel",),
            vmem_limit_bytes=32 * 1024 * 1024,
        ),
    )(gates, whh_all)


# ---------------- fused tail: second bi-LSTM (H=6) + concat + Linear(24,6)+Sigmoid -----
def _tail_kernel(seq_ref, wih_ref, whh_ref, b_ref, fcw_ref, fcb_ref, o_ref):
    # seq_ref: (2, T, Bp, 2H1) bf16 | wih_ref: (2, 2, 2H1, 24) | whh_ref: (2, 2, 6, 24)
    # b_ref: (2, 2, 1, 24) | fcw_ref: (24, 6) | fcb_ref: (1, 6) | o_ref: (Bp, 6)
    _, t_len, bp, k_dim = seq_ref.shape
    h2 = whh_ref.shape[2]
    finals = {}
    for s in range(2):
        xs = seq_ref[s].reshape(t_len * bp, k_dim)                 # bf16, lane-dense
        for d in range(2):
            # hoisted input projection for this tiny chain (bf16 MXU pass)
            gx = (jnp.dot(xs, wih_ref[s, d].astype(jnp.bfloat16),
                          preferred_element_type=jnp.float32)
                  .reshape(t_len, bp, 4 * h2) + b_ref[s, d])
            whh = whh_ref[s, d]
            h = jnp.zeros((bp, h2), jnp.float32)
            c = jnp.zeros((bp, h2), jnp.float32)
            time_order = range(t_len) if d == 0 else range(t_len - 1, -1, -1)
            for te in time_order:                                  # static unrolled, T small
                g = gx[te] + jnp.dot(h, whh, preferred_element_type=jnp.float32)
                i = jax.nn.sigmoid(g[:, 0 * h2:1 * h2])
                f = jax.nn.sigmoid(g[:, 1 * h2:2 * h2])
                gg = jnp.tanh(g[:, 2 * h2:3 * h2])
                o = jax.nn.sigmoid(g[:, 3 * h2:4 * h2])
                c = f * c + i * gg
                h = o * jnp.tanh(c)
            finals[(s, d)] = h                                     # final hidden state h_n[d]

    # cat((rgb_h, thm_h), dim=2).transpose(0,1).flatten(1) -> [rgb_f, thm_f, rgb_b, thm_b]
    img = jnp.concatenate([finals[(0, 0)], finals[(1, 0)],
                           finals[(0, 1)], finals[(1, 1)]], axis=1)        # (Bp, 24)
    z = jnp.dot(img, fcw_ref[...], preferred_element_type=jnp.float32) + fcb_ref[...]
    o_ref[...] = jax.nn.sigmoid(z)


def tail_head(seq, wih2, whh2, b2, fcw, fcb):
    bp = seq.shape[2]
    return pl.pallas_call(
        _tail_kernel,
        out_shape=jax.ShapeDtypeStruct((bp, fcw.shape[1]), jnp.float32),
        in_specs=[pl.BlockSpec(memory_space=VMEM)] * 6,
        out_specs=pl.BlockSpec(memory_space=VMEM),
    )(seq, wih2, whh2, b2, fcw, fcb)


# --------------------------------------- desc.forward ---------------------------------
def desc_forward(thermal_img, rgb_img, params, B, T):
    n = B * T
    feats = backbone_features(rgb_img, thermal_img,
                              params["bb_w1"], params["bb_b1"],
                              params["bb_w2"], params["bb_b2"])             # (2, Np, D) bf16
    d_feat = feats.shape[-1]

    bp = max(8, ((B + 7) // 8) * 8)                          # pad batch to 8 sublanes

    def time_major_padded(fs):
        x = jnp.transpose(fs[:n].reshape(B, T, d_feat), (1, 0, 2))          # (T, B, D)
        if bp != B:
            x = jnp.pad(x, ((0, 0), (0, bp - B), (0, 0)))
        return x.reshape(T * bp, d_feat)

    x_all = jnp.stack([time_major_padded(feats[0]),
                       time_major_padded(feats[1])], axis=0)                # (2, T*Bp, D) bf16

    h1 = params["whh1_all"].shape[2]
    gates = input_projection(x_all, params["wih1_all"], params["b1_all"])   # (2, T*Bp, 8H1) f32
    gates = gates.reshape(2, T, bp, 8 * h1)

    seq = lstm_layer1(gates, params["whh1_all"])                            # (2, T, Bp, 2H1) bf16

    out_p = tail_head(seq, params["wih2_all"], params["whh2_all"],
                      params["b2_all"], params["fc1_w"], params["fc1_b"])   # (Bp, 6) f32
    return out_p[:B]


# ----------------------------------- parameter init -----------------------------------
def _make_bilstm_params(key, din, h):
    ks = jax.random.split(key, 6)
    si = 1.0 / float(din) ** 0.5
    sh = 1.0 / float(h) ** 0.5
    fwd = (jax.random.normal(ks[0], (din, 4 * h), jnp.float32) * si,
           jax.random.normal(ks[1], (h, 4 * h), jnp.float32) * sh,
           jax.random.normal(ks[2], (1, 4 * h), jnp.float32) * sh)
    bwd = (jax.random.normal(ks[3], (din, 4 * h), jnp.float32) * si,
           jax.random.normal(ks[4], (h, 4 * h), jnp.float32) * sh,
           jax.random.normal(ks[5], (1, 4 * h), jnp.float32) * sh)
    return fwd, bwd


def build_layer1_params(key, din, h):
    per_stream = [_make_bilstm_params(k, din, h) for k in jax.random.split(key, 2)]
    wih = jnp.stack([jnp.concatenate([p[0][0], p[1][0]], axis=1) for p in per_stream], 0)
    b = jnp.stack([jnp.concatenate([p[0][2], p[1][2]], axis=1) for p in per_stream], 0)
    whh = jnp.stack([jnp.stack([p[0][1], p[1][1]], axis=0) for p in per_stream], 0)
    return wih.astype(jnp.bfloat16), whh.astype(jnp.bfloat16), b


def build_layer2_params(key, din, h):
    per_stream = [_make_bilstm_params(k, din, h) for k in jax.random.split(key, 2)]
    wih = jnp.stack([jnp.stack([p[0][0], p[1][0]], 0) for p in per_stream], 0)
    whh = jnp.stack([jnp.stack([p[0][1], p[1][1]], 0) for p in per_stream], 0)
    b = jnp.stack([jnp.stack([p[0][2], p[1][2]], 0) for p in per_stream], 0)
    return wih, whh, b


def build_backbone_params(key, c, f1, d):
    k1, k2, k3, k4 = jax.random.split(key, 4)
    return (jax.random.normal(k1, (f1, c), jnp.float32) * 0.1,          # w1 transposed (F1, C)
            jax.random.normal(k2, (f1, 1), jnp.float32) * 0.1,
            (jax.random.normal(k3, (f1, d), jnp.float32) * 0.1).astype(jnp.bfloat16),
            jax.random.normal(k4, (1, d), jnp.float32) * 0.1)


if __name__ == "__main__":
    # Small shapes consistent with the module (original: B=4, T=15, 224x224, D=4096, H1=512).
    B, T = 2, 4
    C, HH, WW = 3, 16, 16
    F1, D = 32, 256
    H1, H2 = 128, 6          # H2 kept at 6 so Conv_LSTM's h_out branch and Linear(24,6) apply

    key = jax.random.PRNGKey(0)
    keys = jax.random.split(key, 8)

    thermal = jax.random.normal(keys[0], (B * T, C, HH, WW), jnp.float32)
    rgb = jax.random.normal(keys[1], (B * T, C, HH, WW), jnp.float32)

    rgb_bb = build_backbone_params(keys[2], C, F1, D)
    thm_bb = build_backbone_params(keys[3], C, F1, D)
    params = {
        # stream 0 = rgb, stream 1 = thermal (backbones fused into one pallas_call)
        "bb_w1": jnp.stack([rgb_bb[0], thm_bb[0]], 0),
        "bb_b1": jnp.stack([rgb_bb[1], thm_bb[1]], 0),
        "bb_w2": jnp.stack([rgb_bb[2], thm_bb[2]], 0),
        "bb_b2": jnp.stack([rgb_bb[3], thm_bb[3]], 0),
        # fc1: xavier-normal style init (gain for relu), zero bias — as in init_weights
        "fc1_w": jax.random.normal(keys[6], (24, 6), jnp.float32)
                 * (2.0 ** 0.5) * (2.0 / (24 + 6)) ** 0.5,
        "fc1_b": jnp.zeros((1, 6), jnp.float32),
    }
    params["wih1_all"], params["whh1_all"], params["b1_all"] = build_layer1_params(keys[4], D, H1)
    params["wih2_all"], params["whh2_all"], params["b2_all"] = build_layer2_params(keys[5], 2 * H1, H2)

    out = desc_forward(thermal, rgb, params, B, T)
    out = jax.block_until_ready(out)
    assert out.shape == (B, 6) and out.dtype == jnp.float32
    print("KERNEL_OK")
</pallas_src>

<mosaic_0001>
module attributes {stable_mosaic.version = 11 : i64} {
  func.func @_feat_kernel(%arg0: i32, %arg1: i32, %arg2: i32, %arg3: memref<1x3x8x256xbf16, #tpu.memory_space<vmem>>, %arg4: memref<1x32x3xf32, #tpu.memory_space<vmem>>, %arg5: memref<1x32x1xf32, #tpu.memory_space<vmem>>, %arg6: memref<1x32x256xbf16, #tpu.memory_space<vmem>>, %arg7: memref<1x1x256xf32, #tpu.memory_space<vmem>>, %arg8: memref<1x8x256xbf16, #tpu.memory_space<vmem>>, %arg9: memref<8x32xf32, #tpu.memory_space<vmem>>) attributes {dimension_semantics = [#tpu.dimension_semantics<parallel>, #tpu.dimension_semantics<parallel>, #tpu.dimension_semantics<arbitrary>], iteration_bounds = array<i64: 2, 1, 1>, scalar_prefetch = 0 : i64, scratch_operands = 1 : i64, tpu.core_type = #tpu.core_type<tc>, window_params = [{transform_indices = @transform_0, window_bounds = array<i64: 1, 3, 8, 256>}, {transform_indices = @transform_1, window_bounds = array<i64: 1, 32, 3>}, {transform_indices = @transform_2, window_bounds = array<i64: 1, 32, 1>}, {transform_indices = @transform_3, window_bounds = array<i64: 1, 32, 256>}, {transform_indices = @transform_4, window_bounds = array<i64: 1, 1, 256>}, {transform_indices = @transform_5, window_bounds = array<i64: 1, 8, 256>}]} {
    %c0_i32 = arith.constant 0 : i32
    %0 = arith.cmpi eq, %arg2, %c0_i32 : i32
    %1 = arith.extui %0 : i1 to i32
    %c0_i32_0 = arith.constant 0 : i32
    %2 = arith.cmpi ne, %1, %c0_i32_0 : i32
    scf.if %2 {
      %cst_72 = arith.constant 0.000000e+00 : f32
      %151 = vector.broadcast %cst_72 : f32 to vector<8x32xf32>
      %c0_73 = arith.constant 0 : index
      %c0_74 = arith.constant 0 : index
      %152 = vector.load %arg9[%c0_73, %c0_74] : memref<8x32xf32, #tpu.memory_space<vmem>>, vector<8x32xf32>
      tpu.vector_store %arg9[%c0_73, %c0_74], %151 {strides = array<i32>} : memref<8x32xf32, #tpu.memory_space<vmem>>, vector<8x32xf32>,
    } else {
    }
    %c0 = arith.constant 0 : index
    %c0_1 = arith.constant 0 : index
    %c0_2 = arith.constant 0 : index
    %c0_3 = arith.constant 0 : index
    %3 = vector.load %arg3[%c0, %c0_1, %c0_2, %c0_3] : memref<1x3x8x256xbf16, #tpu.memory_space<vmem>>, vector<1x1x8x256xbf16>
    %4 = vector.shape_cast %3 : vector<1x1x8x256xbf16> to vector<8x256xbf16>
    %5 = arith.extf %4 : vector<8x256xbf16> to vector<8x256xf32>
    %c0_4 = arith.constant 0 : index
    %c1 = arith.constant 1 : index
    %c0_5 = arith.constant 0 : index
    %c0_6 = arith.constant 0 : index
    %6 = vector.load %arg3[%c0_4, %c1, %c0_5, %c0_6] : memref<1x3x8x256xbf16, #tpu.memory_space<vmem>>, vector<1x1x8x256xbf16>
    %7 = vector.shape_cast %6 : vector<1x1x8x256xbf16> to vector<8x256xbf16>
    %8 = arith.extf %7 : vector<8x256xbf16> to vector<8x256xf32>
    %c0_7 = arith.constant 0 : index
    %c2 = arith.constant 2 : index
    %c0_8 = arith.constant 0 : index
    %c0_9 = arith.constant 0 : index
    %9 = vector.load %arg3[%c0_7, %c2, %c0_8, %c0_9] : memref<1x3x8x256xbf16, #tpu.memory_space<vmem>>, vector<1x1x8x256xbf16>
    %10 = vector.shape_cast %9 : vector<1x1x8x256xbf16> to vector<8x256xbf16>
    %11 = arith.extf %10 : vector<8x256xbf16> to vector<8x256xf32>
    %cst = arith.constant 0.000000e+00 : f32
    %12 = vector.broadcast %cst : f32 to vector<8x8x256xf32>
    %c0_10 = arith.constant 0 : index
    %c0_11 = arith.constant 0 : index
    %c0_12 = arith.constant 0 : index
    %13 = vector.load %arg5[%c0_10, %c0_11, %c0_12] : memref<1x32x1xf32, #tpu.memory_space<vmem>>, vector<1x8x1xf32>
    %14 = vector.shape_cast %13 : vector<1x8x1xf32> to vector<8x1xf32>
    %15 = vector.shape_cast %14 : vector<8x1xf32> to vector<1x8x1xf32>
    %16 = vector.broadcast %15 : vector<1x8x1xf32> to vector<8x8x256xf32>
    %17 = arith.addf %12, %16 : vector<8x8x256xf32>
    %18 = vector.shape_cast %5 : vector<8x256xf32> to vector<8x1x256xf32>
    %c0_13 = arith.constant 0 : index
    %c0_14 = arith.constant 0 : index
    %c0_15 = arith.constant 0 : index
    %19 = vector.load %arg4[%c0_13, %c0_14, %c0_15] : memref<1x32x3xf32, #tpu.memory_space<vmem>>, vector<1x8x1xf32>
    %20 = vector.shape_cast %19 : vector<1x8x1xf32> to vector<8x1xf32>
    %21 = vector.shape_cast %20 : vector<8x1xf32> to vector<1x8x1xf32>
    %22 = vector.broadcast %18 : vector<8x1x256xf32> to vector<8x8x256xf32>
    %23 = vector.broadcast %21 : vector<1x8x1xf32> to vector<8x8x256xf32>
    %24 = arith.mulf %22, %23 : vector<8x8x256xf32>
    %25 = arith.addf %17, %24 : vector<8x8x256xf32>
    %26 = vector.shape_cast %8 : vector<8x256xf32> to vector<8x1x256xf32>
    %c0_16 = arith.constant 0 : index
    %c0_17 = arith.constant 0 : index
    %c1_18 = arith.constant 1 : index
    %27 = vector.load %arg4[%c0_16, %c0_17, %c1_18] : memref<1x32x3xf32, #tpu.memory_space<vmem>>, vector<1x8x1xf32>
    %28 = vector.shape_cast %27 : vector<1x8x1xf32> to vector<8x1xf32>
    %29 = vector.shape_cast %28 : vector<8x1xf32> to vector<1x8x1xf32>
    %30 = vector.broadcast %26 : vector<8x1x256xf32> to vector<8x8x256xf32>
    %31 = vector.broadcast %29 : vector<1x8x1xf32> to vector<8x8x256xf32>
    %32 = arith.mulf %30, %31 : vector<8x8x256xf32>
    %33 = arith.addf %25, %32 : vector<8x8x256xf32>
    %34 = vector.shape_cast %11 : vector<8x256xf32> to vector<8x1x256xf32>
    %c0_19 = arith.constant 0 : index
    %c0_20 = arith.constant 0 : index
    %c2_21 = arith.constant 2 : index
    %35 = vector.load %arg4[%c0_19, %c0_20, %c2_21] : memref<1x32x3xf32, #tpu.memory_space<vmem>>, vector<1x8x1xf32>
    %36 = vector.shape_cast %35 : vector<1x8x1xf32> to vector<8x1xf32>
    %37 = vector.shape_cast %36 : vector<8x1xf32> to vector<1x8x1xf32>
    %38 = vector.broadcast %34 : vector<8x1x256xf32> to vector<8x8x256xf32>
    %39 = vector.broadcast %37 : vector<1x8x1xf32> to vector<8x8x256xf32>
    %40 = arith.mulf %38, %39 : vector<8x8x256xf32>
    %41 = arith.addf %33, %40 : vector<8x8x256xf32>
    %cst_22 = arith.constant 0.000000e+00 : f32
    %42 = vector.broadcast %cst_22 : f32 to vector<8x8x256xf32>
    %43 = arith.maximumf %41, %42 : vector<8x8x256xf32>
    %cst_23 = arith.constant dense<0.000000e+00> : vector<8x8xf32>
    %44 = vector.multi_reduction <add>, %43, %cst_23 [2] : vector<8x8x256xf32> to vector<8x8xf32>
    %cst_24 = arith.constant 0.000000e+00 : f32
    %45 = vector.broadcast %cst_24 : f32 to vector<8x8x256xf32>
    %c0_25 = arith.constant 0 : index
    %c8 = arith.constant 8 : index
    %c0_26 = arith.constant 0 : index
    %46 = vector.load %arg5[%c0_25, %c8, %c0_26] : memref<1x32x1xf32, #tpu.memory_space<vmem>>, vector<1x8x1xf32>
    %47 = vector.shape_cast %46 : vector<1x8x1xf32> to vector<8x1xf32>
    %48 = vector.shape_cast %47 : vector<8x1xf32> to vector<1x8x1xf32>
    %49 = vector.broadcast %48 : vector<1x8x1xf32> to vector<8x8x256xf32>
    %50 = arith.addf %45, %49 : vector<8x8x256xf32>
    %51 = vector.shape_cast %5 : vector<8x256xf32> to vector<8x1x256xf32>
    %c0_27 = arith.constant 0 : index
    %c8_28 = arith.constant 8 : index
    %c0_29 = arith.constant 0 : index
    %52 = vector.load %arg4[%c0_27, %c8_28, %c0_29] : memref<1x32x3xf32, #tpu.memory_space<vmem>>, vector<1x8x1xf32>
    %53 = vector.shape_cast %52 : vector<1x8x1xf32> to vector<8x1xf32>
    %54 = vector.shape_cast %53 : vector<8x1xf32> to vector<1x8x1xf32>
    %55 = vector.broadcast %51 : vector<8x1x256xf32> to vector<8x8x256xf32>
    %56 = vector.broadcast %54 : vector<1x8x1xf32> to vector<8x8x256xf32>
    %57 = arith.mulf %55, %56 : vector<8x8x256xf32>
    %58 = arith.addf %50, %57 : vector<8x8x256xf32>
    %59 = vector.shape_cast %8 : vector<8x256xf32> to vector<8x1x256xf32>
    %c0_30 = arith.constant 0 : index
    %c8_31 = arith.constant 8 : index
    %c1_32 = arith.constant 1 : index
    %60 = vector.load %arg4[%c0_30, %c8_31, %c1_32] : memref<1x32x3xf32, #tpu.memory_space<vmem>>, vector<1x8x1xf32>
    %61 = vector.shape_cast %60 : vector<1x8x1xf32> to vector<8x1xf32>
    %62 = vector.shape_cast %61 : vector<8x1xf32> to vector<1x8x1xf32>
    %63 = vector.broadcast %59 : vector<8x1x256xf32> to vector<8x8x256xf32>
    %64 = vector.broadcast %62 : vector<1x8x1xf32> to vector<8x8x256xf32>
    %65 = arith.mulf %63, %64 : vector<8x8x256xf32>
    %66 = arith.addf %58, %65 : vector<8x8x256xf32>
    %67 = vector.shape_cast %11 : vector<8x256xf32> to vector<8x1x256xf32>
    %c0_33 = arith.constant 0 : index
    %c8_34 = arith.constant 8 : index
    %c2_35 = arith.constant 2 : index
    %68 = vector.load %arg4[%c0_33, %c8_34, %c2_35] : memref<1x32x3xf32, #tpu.memory_space<vmem>>, vector<1x8x1xf32>
    %69 = vector.shape_cast %68 : vector<1x8x1xf32> to vector<8x1xf32>
    %70 = vector.shape_cast %69 : vector<8x1xf32> to vector<1x8x1xf32>
    %71 = vector.broadcast %67 : vector<8x1x256xf32> to vector<8x8x256xf32>
    %72 = vector.broadcast %70 : vector<1x8x1xf32> to vector<8x8x256xf32>
    %73 = arith.mulf %71, %72 : vector<8x8x256xf32>
    %74 = arith.addf %66, %73 : vector<8x8x256xf32>
    %cst_36 = arith.constant 0.000000e+00 : f32
    %75 = vector.broadcast %cst_36 : f32 to vector<8x8x256xf32>
    %76 = arith.maximumf %74, %75 : vector<8x8x256xf32>
    %cst_37 = arith.constant dense<0.000000e+00> : vector<8x8xf32>
    %77 = vector.multi_reduction <add>, %76, %cst_37 [2] : vector<8x8x256xf32> to vector<8x8xf32>
    %cst_38 = arith.constant 0.000000e+00 : f32
    %78 = vector.broadcast %cst_38 : f32 to vector<8x8x256xf32>
    %c0_39 = arith.constant 0 : index
    %c16 = arith.constant 16 : index
    %c0_40 = arith.constant 0 : index
    %79 = vector.load %arg5[%c0_39, %c16, %c0_40] : memref<1x32x1xf32, #tpu.memory_space<vmem>>, vector<1x8x1xf32>
    %80 = vector.shape_cast %79 : vector<1x8x1xf32> to vector<8x1xf32>
    %81 = vector.shape_cast %80 : vector<8x1xf32> to vector<1x8x1xf32>
    %82 = vector.broadcast %81 : vector<1x8x1xf32> to vector<8x8x256xf32>
    %83 = arith.addf %78, %82 : vector<8x8x256xf32>
    %84 = vector.shape_cast %5 : vector<8x256xf32> to vector<8x1x256xf32>
    %c0_41 = arith.constant 0 : index
    %c16_42 = arith.constant 16 : index
    %c0_43 = arith.constant 0 : index
    %85 = vector.load %arg4[%c0_41, %c16_42, %c0_43] : memref<1x32x3xf32, #tpu.memory_space<vmem>>, vector<1x8x1xf32>
    %86 = vector.shape_cast %85 : vector<1x8x1xf32> to vector<8x1xf32>
    %87 = vector.shape_cast %86 : vector<8x1xf32> to vector<1x8x1xf32>
    %88 = vector.broadcast %84 : vector<8x1x256xf32> to vector<8x8x256xf32>
    %89 = vector.broadcast %87 : vector<1x8x1xf32> to vector<8x8x256xf32>
    %90 = arith.mulf %88, %89 : vector<8x8x256xf32>
    %91 = arith.addf %83, %90 : vector<8x8x256xf32>
    %92 = vector.shape_cast %8 : vector<8x256xf32> to vector<8x1x256xf32>
    %c0_44 = arith.constant 0 : index
    %c16_45 = arith.constant 16 : index
    %c1_46 = arith.constant 1 : index
    %93 = vector.load %arg4[%c0_44, %c16_45, %c1_46] : memref<1x32x3xf32, #tpu.memory_space<vmem>>, vector<1x8x1xf32>
    %94 = vector.shape_cast %93 : vector<1x8x1xf32> to vector<8x1xf32>
    %95 = vector.shape_cast %94 : vector<8x1xf32> to vector<1x8x1xf32>
    %96 = vector.broadcast %92 : vector<8x1x256xf32> to vector<8x8x256xf32>
    %97 = vector.broadcast %95 : vector<1x8x1xf32> to vector<8x8x256xf32>
    %98 = arith.mulf %96, %97 : vector<8x8x256xf32>
    %99 = arith.addf %91, %98 : vector<8x8x256xf32>
    %100 = vector.shape_cast %11 : vector<8x256xf32> to vector<8x1x256xf32>
    %c0_47 = arith.constant 0 : index
    %c16_48 = arith.constant 16 : index
    %c2_49 = arith.constant 2 : index
    %101 = vector.load %arg4[%c0_47, %c16_48, %c2_49] : memref<1x32x3xf32, #tpu.memory_space<vmem>>, vector<1x8x1xf32>
    %102 = vector.shape_cast %101 : vector<1x8x1xf32> to vector<8x1xf32>
    %103 = vector.shape_cast %102 : vector<8x1xf32> to vector<1x8x1xf32>
    %104 = vector.broadcast %100 : vector<8x1x256xf32> to vector<8x8x256xf32>
    %105 = vector.broadcast %103 : vector<1x8x1xf32> to vector<8x8x256xf32>
    %106 = arith.mulf %104, %105 : vector<8x8x256xf32>
    %107 = arith.addf %99, %106 : vector<8x8x256xf32>
    %cst_50 = arith.constant 0.000000e+00 : f32
    %108 = vector.broadcast %cst_50 : f32 to vector<8x8x256xf32>
    %109 = arith.maximumf %107, %108 : vector<8x8x256xf32>
    %cst_51 = arith.constant dense<0.000000e+00> : vector<8x8xf32>
    %110 = vector.multi_reduction <add>, %109, %cst_51 [2] : vector<8x8x256xf32> to vector<8x8xf32>
    %cst_52 = arith.constant 0.000000e+00 : f32
    %111 = vector.broadcast %cst_52 : f32 to vector<8x8x256xf32>
    %c0_53 = arith.constant 0 : index
    %c24 = arith.constant 24 : index
    %c0_54 = arith.constant 0 : index
    %112 = vector.load %arg5[%c0_53, %c24, %c0_54] : memref<1x32x1xf32, #tpu.memory_space<vmem>>, vector<1x8x1xf32>
    %113 = vector.shape_cast %112 : vector<1x8x1xf32> to vector<8x1xf32>
    %114 = vector.shape_cast %113 : vector<8x1xf32> to vector<1x8x1xf32>
    %115 = vector.broadcast %114 : vector<1x8x1xf32> to vector<8x8x256xf32>
    %116 = arith.addf %111, %115 : vector<8x8x256xf32>
    %117 = vector.shape_cast %5 : vector<8x256xf32> to vector<8x1x256xf32>
    %c0_55 = arith.constant 0 : index
    %c24_56 = arith.constant 24 : index
    %c0_57 = arith.constant 0 : index
    %118 = vector.load %arg4[%c0_55, %c24_56, %c0_57] : memref<1x32x3xf32, #tpu.memory_space<vmem>>, vector<1x8x1xf32>
    %119 = vector.shape_cast %118 : vector<1x8x1xf32> to vector<8x1xf32>
    %120 = vector.shape_cast %119 : vector<8x1xf32> to vector<1x8x1xf32>
    %121 = vector.broadcast %117 : vector<8x1x256xf32> to vector<8x8x256xf32>
    %122 = vector.broadcast %120 : vector<1x8x1xf32> to vector<8x8x256xf32>
    %123 = arith.mulf %121, %122 : vector<8x8x256xf32>
    %124 = arith.addf %116, %123 : vector<8x8x256xf32>
    %125 = vector.shape_cast %8 : vector<8x256xf32> to vector<8x1x256xf32>
    %c0_58 = arith.constant 0 : index
    %c24_59 = arith.constant 24 : index
    %c1_60 = arith.constant 1 : index
    %126 = vector.load %arg4[%c0_58, %c24_59, %c1_60] : memref<1x32x3xf32, #tpu.memory_space<vmem>>, vector<1x8x1xf32>
    %127 = vector.shape_cast %126 : vector<1x8x1xf32> to vector<8x1xf32>
    %128 = vector.shape_cast %127 : vector<8x1xf32> to vector<1x8x1xf32>
    %129 = vector.broadcast %125 : vector<8x1x256xf32> to vector<8x8x256xf32>
    %130 = vector.broadcast %128 : vector<1x8x1xf32> to vector<8x8x256xf32>
    %131 = arith.mulf %129, %130 : vector<8x8x256xf32>
    %132 = arith.addf %124, %131 : vector<8x8x256xf32>
    %133 = vector.shape_cast %11 : vector<8x256xf32> to vector<8x1x256xf32>
    %c0_61 = arith.constant 0 : index
    %c24_62 = arith.constant 24 : index
    %c2_63 = arith.constant 2 : index
    %134 = vector.load %arg4[%c0_61, %c24_62, %c2_63] : memref<1x32x3xf32, #tpu.memory_space<vmem>>, vector<1x8x1xf32>
    %135 = vector.shape_cast %134 : vector<1x8x1xf32> to vector<8x1xf32>
    %136 = vector.shape_cast %135 : vector<8x1xf32> to vector<1x8x1xf32>
    %137 = vector.broadcast %133 : vector<8x1x256xf32> to vector<8x8x256xf32>
    %138 = vector.broadcast %136 : vector<1x8x1xf32> to vector<8x8x256xf32>
    %139 = arith.mulf %137, %138 : vector<8x8x256xf32>
    %140 = arith.addf %132, %139 : vector<8x8x256xf32>
    %cst_64 = arith.constant 0.000000e+00 : f32
    %141 = vector.broadcast %cst_64 : f32 to vector<8x8x256xf32>
    %142 = arith.maximumf %140, %141 : vector<8x8x256xf32>
    %cst_65 = arith.constant dense<0.000000e+00> : vector<8x8xf32>
    %143 = vector.multi_reduction <add>, %142, %cst_65 [2] : vector<8x8x256xf32> to vector<8x8xf32>
    %c0_66 = arith.constant 0 : index
    %c0_67 = arith.constant 0 : index
    %144 = vector.load %arg9[%c0_66, %c0_67] : memref<8x32xf32, #tpu.memory_space<vmem>>, vector<8x32xf32>
    %145 = tpu.concatenate %44, %77, %110, %143 in 1 : vector<8x8xf32>, vector<8x8xf32>, vector<8x8xf32>, vector<8x8xf32> -> vector<8x32xf32>
    %146 = arith.addf %144, %145 : vector<8x32xf32>
    %c0_68 = arith.constant 0 : index
    %c0_69 = arith.constant 0 : index
    %147 = vector.load %arg9[%c0_68, %c0_69] : memref<8x32xf32, #tpu.memory_space<vmem>>, vector<8x32xf32>
    tpu.vector_store %arg9[%c0_68, %c0_69], %146 {strides = array<i32>} : memref<8x32xf32, #tpu.memory_space<vmem>>, vector<8x32xf32>,
    %c0_i32_70 = arith.constant 0 : i32
    %148 = arith.cmpi eq, %arg2, %c0_i32_70 : i32
    %149 = arith.extui %148 : i1 to i32
    %c0_i32_71 = arith.constant 0 : i32
    %150 = arith.cmpi ne, %149, %c0_i32_71 : i32
    scf.if %150 {
      %c0_72 = arith.constant 0 : index
      %c0_73 = arith.constant 0 : index
      %151 = vector.load %arg9[%c0_72, %c0_73] : memref<8x32xf32, #tpu.memory_space<vmem>>, vector<8x32xf32>
      %cst_74 = arith.constant 3.906250e-03 : f32
      %152 = vector.broadcast %cst_74 : f32 to vector<8x32xf32>
      %153 = arith.mulf %151, %152 : vector<8x32xf32>
      %154 = arith.truncf %153 : vector<8x32xf32> to vector<8x32xbf16>
      %c0_75 = arith.constant 0 : index
      %c0_76 = arith.constant 0 : index
      %c0_77 = arith.constant 0 : index
      %155 = vector.load %arg6[%c0_75, %c0_76, %c0_77] : memref<1x32x256xbf16, #tpu.memory_space<vmem>>, vector<1x32x256xbf16>
      %156 = vector.shape_cast %155 : vector<1x32x256xbf16> to vector<32x256xbf16>
      %cst_78 = arith.constant dense<0.000000e+00> : vector<8x256xf32>
      %157 = tpu.matmul %154, %156, %cst_78 {dimension_numbers = #tpu.dot_dimension_numbers<[1], [0], [0], [1], [0, 0, 1, 1], [], []>} : vector<8x32xbf16>, vector<32x256xbf16>, vector<8x256xf32> -> vector<8x256xf32>
      %c0_79 = arith.constant 0 : index
      %c0_80 = arith.constant 0 : index
      %c0_81 = arith.constant 0 : index
      %158 = vector.load %arg7[%c0_79, %c0_80, %c0_81] : memref<1x1x256xf32, #tpu.memory_space<vmem>>, vector<1x1x256xf32>
      %159 = vector.shape_cast %158 : vector<1x1x256xf32> to vector<1x256xf32>
      %160 = vector.broadcast %159 : vector<1x256xf32> to vector<8x256xf32>
      %161 = arith.addf %157, %160 : vector<8x256xf32>
      %cst_82 = arith.constant 0.000000e+00 : f32
      %162 = vector.broadcast %cst_82 : f32 to vector<8x256xf32>
      %163 = arith.maximumf %161, %162 : vector<8x256xf32>
      %164 = arith.truncf %163 : vector<8x256xf32> to vector<8x256xbf16>
      %c0_83 = arith.constant 0 : index
      %c0_84 = arith.constant 0 : index
      %c0_85 = arith.constant 0 : index
      %165 = vector.load %arg8[%c0_83, %c0_84, %c0_85] : memref<1x8x256xbf16, #tpu.memory_space<vmem>>, vector<1x8x256xbf16>
      %166 = vector.shape_cast %165 : vector<1x8x256xbf16> to vector<8x256xbf16>
      %167 = vector.shape_cast %164 : vector<8x256xbf16> to vector<1x8x256xbf16>
      tpu.vector_store %arg8[%c0_83, %c0_84, %c0_85], %167 {strides = array<i32>} : memref<1x8x256xbf16, #tpu.memory_space<vmem>>, vector<1x8x256xbf16>,
    } else {
    }
    return
  }
  func.func @transform_0(%arg0: i32, %arg1: i32, %arg2: i32) -> (i32, i32, i32, i32) {
    %c0_i32 = arith.constant 0 : i32
    %c0_i32_0 = arith.constant 0 : i32
    return %arg0, %c0_i32, %arg1, %arg2 : i32, i32, i32, i32
  }
  func.func @transform_1(%arg0: i32, %arg1: i32, %arg2: i32) -> (i32, i32, i32) {
    %c0_i32 = arith.constant 0 : i32
    %c0_i32_0 = arith.constant 0 : i32
    %c0_i32_1 = arith.constant 0 : i32
    return %arg0, %c0_i32, %c0_i32_0 : i32, i32, i32
  }
  func.func @transform_2(%arg0: i32, %arg1: i32, %arg2: i32) -> (i32, i32, i32) {
    %c0_i32 = arith.constant 0 : i32
    %c0_i32_0 = arith.constant 0 : i32
    %c0_i32_1 = arith.constant 0 : i32
    return %arg0, %c0_i32, %c0_i32_0 : i32, i32, i32
  }
  func.func @transform_3(%arg0: i32, %arg1: i32, %arg2: i32) -> (i32, i32, i32) {
    %c0_i32 = arith.constant 0 : i32
    %c0_i32_0 = arith.constant 0 : i32
    %c0_i32_1 = arith.constant 0 : i32
    return %arg0, %c0_i32, %c0_i32_0 : i32, i32, i32
  }
  func.func @transform_4(%arg0: i32, %arg1: i32, %arg2: i32) -> (i32, i32, i32) {
    %c0_i32 = arith.constant 0 : i32
    %c0_i32_0 = arith.constant 0 : i32
    %c0_i32_1 = arith.constant 0 : i32
    return %arg0, %c0_i32, %c0_i32_0 : i32, i32, i32
  }
  func.func @transform_5(%arg0: i32, %arg1: i32, %arg2: i32) -> (i32, i32, i32) {
    %c0_i32 = arith.constant 0 : i32
    %c0_i32_0 = arith.constant 0 : i32
    return %arg0, %arg1, %c0_i32 : i32, i32, i32
  }
}

</mosaic_0001>

<llo_original>
// kernel: tpu_custom_call.1
$region0: #{tpu_custom_call.1}
  #allocation0 [shape = 'u32[]', space=smem, size = 0x4, offset = 0x4, fixed_abs, tag = 'smem constant byte address 0x4 - core index']
  #allocation1 [shape = 'u32[144,128]{1,0:T(1,128)}', space=vmem, size = 0x12000, scoped, tag = 'internal scratch']
  #allocation2 [shape = 'f32[8,32]{1,0:T(8,128)}', space=vmem, size = 0x1000, scoped, tag = 'scratch operand']
  %s0 = inlined_call_operand.vmem [shape: bf16[2,3,8,256], index: 0, kind: input, shape index: {}]
  %s1 = inlined_call_operand.vmem [shape: f32[2,32,3], index: 1, kind: input, shape index: {}]
  %s2 = inlined_call_operand.vmem [shape: f32[2,32,1], index: 2, kind: input, shape index: {}]
  %s3 = inlined_call_operand.vmem [shape: bf16[2,32,256], index: 3, kind: input, shape index: {}]
  %s4 = inlined_call_operand.vmem [shape: f32[2,1,256], index: 4, kind: input, shape index: {}]
  %s5 = inlined_call_operand.hbm [shape: bf16[2,8,256], index: 5, kind: output, shape index: {}]
  %s6 = sld [smem:[#allocation0]]
  $region61: #{tpu_custom_call.1} parent=0
    _
  %s8 = ssub.s32 1, %s6
  %s9 = scalar_select 0, %s8, %s6
  $region1: #{tpu_custom_call.1} parent=0
    #allocation3 [shape = 'u8[8192]{0}', space=vmem, size = 0x2000, scoped, tag = 'output window, operand 0']
    #allocation4 [shape = 's32[2]{0}', space=sflag, size = 0x8, scoped, tag = 'scoped memory for tpu_custom_call.1']
    %10 = vsyncpa [#allocation4], 0
    %s11 = scalar_lea.sflag [#allocation4], 1
    %12 = vsyncpa %s11, 0
    loop: start=0, step=1, limit=4
    $region2: #{tpu_custom_call.1} parent=1 // loop_pre_header
      _
    $region3: #{tpu_custom_call.1} parent=1 // loop_header
      %s14 = sphi 0, %s18
      %p15 = scmp.ge.s32.totalorder %s14, 4
      %s21 = sphi 0, %s40
      %s22 = sphi 0, %s36
      %s23 = sphi 0, %s32
      %s24 = sphi 0, %s21
      %s25 = sphi 0, %s22
      %s26 = sphi 0, %s23
      %s27 = sphi 0, %s24
      %s28 = sphi 0, %s25
      %s29 = sphi 0, %s26
      %s47 = sphi 0, %s49
      %s50 = sphi 0, %s47
      %s51 = sphi 0, %s50
      %s67 = sphi 0, %s51
      %s73 = sphi 0, %s75
      %s76 = sphi 0, %s73
      %s77 = sphi 0, %s76
      %s93 = sphi 0, %s77
      %s99 = sphi 0, %s101
      %s102 = sphi 0, %s99
      %s103 = sphi 0, %s102
      %s119 = sphi 0, %s103
      %s125 = sphi 0, %s127
      %s128 = sphi 0, %s125
      %s129 = sphi 0, %s128
      %s145 = sphi 0, %s129
      %s151 = sphi 0, %s153
      %s154 = sphi 0, %s151
      %s155 = sphi 0, %s154
      %s171 = sphi 0, %s155
      %s179 = sphi 0, %s181
      %s182 = sphi 0, %s179
      %s183 = sphi 0, %s182
      %s199 = sphi 0, %s183
    $region4: #{tpu_custom_call.1} parent=1 // loop_header_branch
      %17 = sbr.rel (%p15) target = $region8
    $region5: #{tpu_custom_call.1} parent=1 // loop_body
      %s19 = ssub.s32 %s14, 1
      %s20 = ssub.s32 %s14, 2
      %s30 = sadd.s32 1, %s23
      %p31 = scmp.ge.s32.totalorder %s30, 1
      %s32 = scalar_select %p31, 0, %s30
      %s33 = sadd.s32 1, %s22
      %s34 = scalar_select %p31, %s33, %s22
      %p35 = scmp.ge.s32.totalorder %s34, 1
      %s36 = scalar_select %p35, 0, %s34
      %s37 = sadd.s32 1, %s21
      %s38 = scalar_select %p35, %s37, %s21
      %p39 = scmp.ge.s32.totalorder %s38, 2
      %s40 = scalar_select %p39, 0, %s38
      %s41 = ssub.s32 %s21, %s40
      %s42 = ssub.s32 %s22, %s36
      %s43 = sor.u32 %s41, %s42
      %s44 = ssub.s32 %s23, %s32
      %s45 = sor.u32 %s43, %s44
      %p46 = scmp.eq.s32.totalorder %s45, 0
      %s48 = sadd.s32 %s47, 1
      %s49 = scalar_select %p46, %s47, %s48
      %p52 = pneg %p46
      %p53 = scmp.eq.s32.totalorder %s14, 1
      %p54 = por %p52, %p53
      %p55 = scmp.ne.s32.totalorder %s47, %s50
      %p56 = scmp.eq.s32.totalorder %s14, 0
      %p57 = por %p55, %p56
      %p58 = scmp.ne.s32.totalorder %s47, %s50
      %p59 = scmp.eq.s32.totalorder %s19, 1
      %p60 = por %p58, %p59
      %p61 = scmp.ne.s32.totalorder %s50, %s51
      %p62 = scmp.eq.s32.totalorder %s19, 0
      %p63 = por %p61, %p62
      %p64 = scmp.ne.s32.totalorder %s50, %s51
      %p65 = scmp.eq.s32.totalorder %s20, 1
      %p66 = por %p64, %p65
      %p68 = scmp.ne.s32.totalorder %s51, %s67
      %p69 = scmp.eq.s32.totalorder %s20, 0
      %p70 = por %p68, %p69
      %s71 = ssub.s32 %s21, %s40
      %p72 = scmp.eq.s32.totalorder %s71, 0
      %s74 = sadd.s32 %s73, 1
      %s75 = scalar_select %p72, %s73, %s74
      %p78 = pneg %p72
      %p79 = scmp.eq.s32.totalorder %s14, 1
      %p80 = por %p78, %p79
      %p81 = scmp.ne.s32.totalorder %s73, %s76
      %p82 = scmp.eq.s32.totalorder %s14, 0
      %p83 = por %p81, %p82
      %p84 = scmp.ne.s32.totalorder %s73, %s76
      %p85 = scmp.eq.s32.totalorder %s19, 1
      %p86 = por %p84, %p85
      %p87 = scmp.ne.s32.totalorder %s76, %s77
      %p88 = scmp.eq.s32.totalorder %s19, 0
      %p89 = por %p87, %p88
      %p90 = scmp.ne.s32.totalorder %s76, %s77
      %p91 = scmp.eq.s32.totalorder %s20, 1
      %p92 = por %p90, %p91
      %p94 = scmp.ne.s32.totalorder %s77, %s93
      %p95 = scmp.eq.s32.totalorder %s20, 0
      %p96 = por %p94, %p95
      %s97 = ssub.s32 %s21, %s40
      %p98 = scmp.eq.s32.totalorder %s97, 0
      %s100 = sadd.s32 %s99, 1
      %s101 = scalar_select %p98, %s99, %s100
      %p104 = pneg %p98
      %p105 = scmp.eq.s32.totalorder %s14, 1
      %p106 = por %p104, %p105
      %p107 = scmp.ne.s32.totalorder %s99, %s102
      %p108 = scmp.eq.s32.totalorder %s14, 0
      %p109 = por %p107, %p108
      %p110 = scmp.ne.s32.totalorder %s99, %s102
      %p111 = scmp.eq.s32.totalorder %s19, 1
      %p112 = por %p110, %p111
      %p113 = scmp.ne.s32.totalorder %s102, %s103
      %p114 = scmp.eq.s32.totalorder %s19, 0
      %p115 = por %p113, %p114
      %p116 = scmp.ne.s32.totalorder %s102, %s103
      %p117 = scmp.eq.s32.totalorder %s20, 1
      %p118 = por %p116, %p117
      %p120 = scmp.ne.s32.totalorder %s103, %s119
      %p121 = scmp.eq.s32.totalorder %s20, 0
      %p122 = por %p120, %p121
      %s123 = ssub.s32 %s21, %s40
      %p124 = scmp.eq.s32.totalorder %s123, 0
      %s126 = sadd.s32 %s125, 1
      %s127 = scalar_select %p124, %s125, %s126
      %p130 = pneg %p124
      %p131 = scmp.eq.s32.totalorder %s14, 1
      %p132 = por %p130, %p131
      %p133 = scmp.ne.s32.totalorder %s125, %s128
      %p134 = scmp.eq.s32.totalorder %s14, 0
      %p135 = por %p133, %p134
      %p136 = scmp.ne.s32.totalorder %s125, %s128
      %p137 = scmp.eq.s32.totalorder %s19, 1
      %p138 = por %p136, %p137
      %p139 = scmp.ne.s32.totalorder %s128, %s129
      %p140 = scmp.eq.s32.totalorder %s19, 0
      %p141 = por %p139, %p140
      %p142 = scmp.ne.s32.totalorder %s128, %s129
      %p143 = scmp.eq.s32.totalorder %s20, 1
      %p144 = por %p142, %p143
      %p146 = scmp.ne.s32.totalorder %s129, %s145
      %p147 = scmp.eq.s32.totalorder %s20, 0
      %p148 = por %p146, %p147
      %s149 = ssub.s32 %s21, %s40
      %p150 = scmp.eq.s32.totalorder %s149, 0
      %s152 = sadd.s32 %s151, 1
      %s153 = scalar_select %p150, %s151, %s152
      %p156 = pneg %p150
      %p157 = scmp.eq.s32.totalorder %s14, 1
      %p158 = por %p156, %p157
      %p159 = scmp.ne.s32.totalorder %s151, %s154
      %p160 = scmp.eq.s32.totalorder %s14, 0
      %p161 = por %p159, %p160
      %p162 = scmp.ne.s32.totalorder %s151, %s154
      %p163 = scmp.eq.s32.totalorder %s19, 1
      %p164 = por %p162, %p163
      %p165 = scmp.ne.s32.totalorder %s154, %s155
      %p166 = scmp.eq.s32.totalorder %s19, 0
      %p167 = por %p165, %p166
      %p168 = scmp.ne.s32.totalorder %s154, %s155
      %p169 = scmp.eq.s32.totalorder %s20, 1
      %p170 = por %p168, %p169
      %p172 = scmp.ne.s32.totalorder %s155, %s171
      %p173 = scmp.eq.s32.totalorder %s20, 0
      %p174 = por %p172, %p173
      %s175 = ssub.s32 %s21, %s40
      %s176 = ssub.s32 %s22, %s36
      %s177 = sor.u32 %s175, %s176
      %p178 = scmp.eq.s32.totalorder %s177, 0
      %s180 = sadd.s32 %s179, 1
      %s181 = scalar_select %p178, %s179, %s180
      %p184 = pneg %p178
      %p185 = scmp.eq.s32.totalorder %s14, 1
      %p186 = por %p184, %p185
      %p187 = scmp.ne.s32.totalorder %s179, %s182
      %p188 = scmp.eq.s32.totalorder %s14, 0
      %p189 = por %p187, %p188
      %p190 = scmp.ne.s32.totalorder %s179, %s182
      %p191 = scmp.eq.s32.totalorder %s19, 1
      %p192 = por %p190, %p191
      %p193 = scmp.ne.s32.totalorder %s182, %s183
      %p194 = scmp.eq.s32.totalorder %s19, 0
      %p195 = por %p193, %p194
      %p196 = scmp.ne.s32.totalorder %s182, %s183
      %p197 = scmp.eq.s32.totalorder %s20, 1
      %p198 = por %p196, %p197
      %p200 = scmp.ne.s32.totalorder %s183, %s199
      %p201 = scmp.eq.s32.totalorder %s20, 0
      %p202 = por %p200, %p201
      %p203 = scmp.le.s32.totalorder 1, %s14
      %p204 = scmp.lt.s32.totalorder %s14, 3
      %p205 = pnand %p203, %p204
      %p206 = pneg %p205
      // Predicated region
      $region9: #{tpu_custom_call.1} parent=5 // pred_check
        _
      $region10: #{tpu_custom_call.1} parent=5 // pred_check_branch
        %208 = sbr.rel (%p205) target = $region12
      $region11: #{tpu_custom_call.1} parent=5 // pred_region
        %s209 = ssub.s32 %s14, 1
      $region12: #{tpu_custom_call.1} parent=5 // pred_fallthru
        _
      %p210 = scmp.lt.s32.totalorder %s14, 2
      // Predicated region
      $region13: #{tpu_custom_call.1} parent=5 // pred_check
        %p211 = pneg %p210
      $region14: #{tpu_custom_call.1} parent=5 // pred_check_branch
        %213 = sbr.rel (%p211) target = $region16
      $region15: #{tpu_custom_call.1} parent=5 // pred_region
        // Predicated region
        $region17: #{tpu_custom_call.1} parent=15 // pred_check
          %p214 = pneg %p57
        $region18: #{tpu_custom_call.1} parent=15 // pred_check_branch
          %216 = sbr.rel (%p214) target = $region20
        $region19: #{tpu_custom_call.1} parent=15 // pred_region
          %s217 = smul.u32 2, %s23
          %p218 = scmp.lt.s32.totalorder %s21, 1
          %s219 = scalar_select %p218, %s21, 1
          %p220 = scmp.lt.s32.totalorder %s22, 0
          %s221 = scalar_select %p220, %s22, 0
          %p222 = scmp.lt.s32.totalorder %s217, 1
          %s223 = scalar_select %p222, %s217, 1
          %s224 = smul.addr %s221, 2
          %s225 = sadd.s32 %s223, %s224
          %s226 = smul.addr %s219, 6
          %s227 = sadd.s32 %s225, %s226
          %s228 = smul.addr %s227, 4
          %s229 = scalar_lea.vmem %s0, %s228
          %s230 = smul.u32 2, %s23
        $region20: #{tpu_custom_call.1} parent=15 // pred_fallthru
          _
        // Predicated region
        $region21: #{tpu_custom_call.1} parent=15 // pred_check
          %p231 = pneg %p83
        $region22: #{tpu_custom_call.1} parent=15 // pred_check_branch
          %233 = sbr.rel (%p231) target = $region24
        $region23: #{tpu_custom_call.1} parent=15 // pred_region
          %p234 = scmp.lt.s32.totalorder %s21, 1
          %s235 = scalar_select %p234, %s21, 1
          %s236 = smul.addr %s235, 4
          %s237 = smul.addr %s236, 8
          %s238 = scalar_lea.vmem %s1, %s237
        $region24: #{tpu_custom_call.1} parent=15 // pred_fallthru
          _
        // Predicated region
        $region25: #{tpu_custom_call.1} parent=15 // pred_check
          %p239 = pneg %p109
        $region26: #{tpu_custom_call.1} parent=15 // pred_check_branch
          %241 = sbr.rel (%p239) target = $region28
        $region27: #{tpu_custom_call.1} parent=15 // pred_region
          %p242 = scmp.lt.s32.totalorder %s21, 1
          %s243 = scalar_select %p242, %s21, 1
          %s244 = smul.addr %s243, 4
          %s245 = smul.addr %s244, 8
          %s246 = scalar_lea.vmem %s2, %s245
        $region28: #{tpu_custom_call.1} parent=15 // pred_fallthru
          _
        // Predicated region
        $region29: #{tpu_custom_call.1} parent=15 // pred_check
          %p247 = pneg %p135
        $region30: #{tpu_custom_call.1} parent=15 // pred_check_branch
          %249 = sbr.rel (%p247) target = $region32
        $region31: #{tpu_custom_call.1} parent=15 // pred_region
          %p250 = scmp.lt.s32.totalorder %s21, 1
          %s251 = scalar_select %p250, %s21, 1
          %s252 = smul.addr %s251, 8
          %s253 = smul.addr %s252, 4
          %s254 = scalar_lea.vmem %s3, %s253
        $region32: #{tpu_custom_call.1} parent=15 // pred_fallthru
          _
        // Predicated region
        $region33: #{tpu_custom_call.1} parent=15 // pred_check
          %p255 = pneg %p161
        $region34: #{tpu_custom_call.1} parent=15 // pred_check_branch
          %257 = sbr.rel (%p255) target = $region36
        $region35: #{tpu_custom_call.1} parent=15 // pred_region
          %p258 = scmp.lt.s32.totalorder %s21, 1
          %s259 = scalar_select %p258, %s21, 1
          %s260 = smul.addr %s259, 2
          %s261 = scalar_lea.vmem %s4, %s260
        $region36: #{tpu_custom_call.1} parent=15 // pred_fallthru
          _
      $region16: #{tpu_custom_call.1} parent=5 // pred_fallthru
        _
      %p262 = scmp.le.s32.totalorder 1, %s14
      %p263 = scmp.lt.s32.totalorder %s14, 3
      %p264 = pnand %p262, %p263
      %p265 = pneg %p264
      // Predicated region
      $region37: #{tpu_custom_call.1} parent=5 // pred_check
        _
      $region38: #{tpu_custom_call.1} parent=5 // pred_check_branch
        %267 = sbr.rel (%p264) target = $region40
      $region39: #{tpu_custom_call.1} parent=5 // pred_region
        %s268 = ssub.s32 %s14, 1
        %s269 = smul.u32 2, %s26
        %p270 = scmp.lt.s32.totalorder %s24, 1
        %s271 = scalar_select %p270, %s24, 1
        %p272 = scmp.lt.s32.totalorder %s25, 0
        %s273 = scalar_select %p272, %s25, 0
        %p274 = scmp.lt.s32.totalorder %s269, 1
        %s275 = scalar_select %p274, %s269, 1
        %s276 = smul.addr %s273, 2
        %s277 = sadd.s32 %s275, %s276
        %s278 = smul.addr %s271, 6
        %s279 = sadd.s32 %s277, %s278
        %s280 = smul.addr %s279, 4
        %s281 = scalar_lea.vmem %s0, %s280
        %p282 = pneg %p63
        %p283 = pneg %p60
        %p284 = scmp.lt.s32.totalorder %s24, 1
        %s285 = scalar_select %p284, %s24, 1
        %s286 = smul.addr %s285, 4
        %s287 = smul.addr %s286, 8
        %s288 = scalar_lea.vmem %s1, %s287
        %p289 = pneg %p89
        %p290 = pneg %p86
        %p291 = scmp.lt.s32.totalorder %s24, 1
        %s292 = scalar_select %p291, %s24, 1
        %s293 = smul.addr %s292, 4
        %s294 = smul.addr %s293, 8
        %s295 = scalar_lea.vmem %s2, %s294
        %p296 = pneg %p115
        %p297 = pneg %p112
        %p298 = scmp.lt.s32.totalorder %s24, 1
        %s299 = scalar_select %p298, %s24, 1
        %s300 = smul.addr %s299, 8
        %s301 = smul.addr %s300, 4
        %s302 = scalar_lea.vmem %s3, %s301
        %p303 = pneg %p141
        %p304 = pneg %p138
        %p305 = scmp.lt.s32.totalorder %s24, 1
        %s306 = scalar_select %p305, %s24, 1
        %s307 = smul.addr %s306, 2
        %s308 = scalar_lea.vmem %s4, %s307
        %p309 = pneg %p167
        %p310 = pneg %p164
        %p311 = pneg %p195
        %p312 = pneg %p192
        %s313 = sand.u32 %s182, 1
        %s314 = scalar_lea.sflag [#allocation4], %s313
        %s315 = sand.u32 %s182, 1
        %s316 = smul.addr %s315, 8
        %s317 = scalar_lea.vmem [#allocation3], %s316
        %s318 = smul.u32 2, %s26
        %p319 = scmp.lt.s32.totalorder %s24, 1
        %s320 = scalar_select %p319, %s24, 1
        %p321 = scmp.lt.s32.totalorder %s25, 0
        %s322 = scalar_select %p321, %s25, 0
        %p323 = scmp.lt.s32.totalorder %s318, 1
        %s324 = scalar_select %p323, %s318, 1
        %s325 = smul.addr %s322, 2
        %s326 = sadd.s32 %s324, %s325
        %s327 = smul.addr %s320, 6
        %s328 = sadd.s32 %s326, %s327
        %s329 = smul.addr %s328, 4
        %s330 = scalar_lea.vmem %s0, %s329
        %s331 = smul.u32 2, %s26
        %p332 = scmp.lt.s32.totalorder %s24, 1
        %s333 = scalar_select %p332, %s24, 1
        %s334 = smul.addr %s333, 4
        %s335 = smul.addr %s334, 8
        %s336 = scalar_lea.vmem %s1, %s335
        %p337 = scmp.lt.s32.totalorder %s24, 1
        %s338 = scalar_select %p337, %s24, 1
        %s339 = smul.addr %s338, 4
        %s340 = smul.addr %s339, 8
        %s341 = scalar_lea.vmem %s2, %s340
        %p342 = scmp.lt.s32.totalorder %s24, 1
        %s343 = scalar_select %p342, %s24, 1
        %s344 = smul.addr %s343, 8
        %s345 = smul.addr %s344, 4
        %s346 = scalar_lea.vmem %s3, %s345
        %p347 = scmp.lt.s32.totalorder %s24, 1
        %s348 = scalar_select %p347, %s24, 1
        %s349 = smul.addr %s348, 2
        %s350 = scalar_lea.vmem %s4, %s349
        %p352 = scmp.eq.s32.totalorder %s26, 0
        // Predicated region
        $region41: #{tpu_custom_call.1} parent=39 // pred_check
          %p353 = pneg %p352
        $region42: #{tpu_custom_call.1} parent=39 // pred_check_branch
          %355 = sbr.rel (%p353) target = $region44
        $region43: #{tpu_custom_call.1} parent=39 // pred_region
          %vm356 = vcmask 261120
          %357 = vst.msk [vmem:[#allocation2] sm:$0xff] %vm356, 0.0
        $region44: #{tpu_custom_call.1} parent=39 // pred_fallthru
          _
        %v358 = vld [vmem:[%s330] sm:$0xff]
        %v359 = vunpack.c.l.bf16 %v358
        %v360 = vunpack.c.h.bf16 %v358
        %s361 = scalar_lea.vmem %s330, 8
        %v362 = vld [vmem:[%s361] sm:$0xff]
        %v363 = vunpack.c.l.bf16 %v362
        %v364 = vunpack.c.h.bf16 %v362
        %s365 = scalar_lea.vmem %s330, 16
        %v366 = vld [vmem:[%s365] sm:$0xff]
        %v367 = vunpack.c.l.bf16 %v366
        %v368 = vunpack.c.h.bf16 %v366
        %v369 = vld [vmem:[%s341] sm:$0xff]
        %371 = vset.pattern.permute.xlu0 0
        %372 = vperm.xlu0 %371, %v369
        %v373 = vpop.permute.xlu0 %372
        %v375 = vadd.f32 %v373, 0.0
        %v378 = vcombine.low %v359, %v360
        %v379 = vcombine.high %v359, %v360
        %v381 = vunpack.c.l.s4 1966171168
        %v382 = vunpack.c.0.s8 %v381
        %v383 = vlaneseq
        %v384 = vshrl.u32 %v383, 7
        %v385 = vsub.s32 %v382, %v384
        %v386 = vrot.slane %v378, %v385
        %v388 = vunpack.c.l.s4 1966171168
        %v389 = vunpack.c.0.s8 %v388
        %v390 = vlaneseq
        %v391 = vshrl.u32 %v390, 7
        %v392 = vsub.s32 %v389, %v391
        %v393 = vrot.slane %v379, %v392
        %v394 = vcombine.high %v386, %v386
        %v395 = vcombine.high %v393, %v393
        %v397 = vunpack.c.l.s4 1966171168
        %v398 = vunpack.c.0.s8 %v397
        %v399 = vlaneseq
        %v400 = vshrl.u32 %v399, 7
        %v401 = vsub.s32 %v398, %v400
        %v402 = vrot.slane %v386, %v401
        %v404 = vunpack.c.l.s4 1966171168
        %v405 = vunpack.c.0.s8 %v404
        %v406 = vlaneseq
        %v407 = vshrl.u32 %v406, 7
        %v408 = vsub.s32 %v405, %v407
        %v409 = vrot.slane %v393, %v408
        %v411 = vunpack.c.l.s4 1966171168
        %v412 = vunpack.c.0.s8 %v411
        %v413 = vlaneseq
        %v414 = vshrl.u32 %v413, 7
        %v415 = vsub.s32 %v412, %v414
        %v416 = vrot.slane %v394, %v415
        %v418 = vunpack.c.l.s4 1966171168
        %v419 = vunpack.c.0.s8 %v418
        %v420 = vlaneseq
        %v421 = vshrl.u32 %v420, 7
        %v422 = vsub.s32 %v419, %v421
        %v423 = vrot.slane %v395, %v422
        %v424 = vcombine.high %v402, %v402
        %v425 = vcombine.high %v409, %v409
        %v426 = vcombine.high %v416, %v416
        %v427 = vcombine.high %v423, %v423
        %v428 = vld [vmem:[%s336] sm:$0xff]
        %v429 = vlaneseq
        %v430 = vshrl.u32 %v429, 7
        %v431 = vsub.s32 0, %v430
        %v432 = vrot.slane %v402, %v431
        %v433 = vlaneseq
        %v434 = vshrl.u32 %v433, 7
        %v435 = vsub.s32 1, %v434
        %v436 = vrot.slane %v402, %v435
        %v437 = vlaneseq
        %v438 = vshrl.u32 %v437, 7
        %v439 = vsub.s32 0, %v438
        %v440 = vrot.slane %v416, %v439
        %v441 = vlaneseq
        %v442 = vshrl.u32 %v441, 7
        %v443 = vsub.s32 1, %v442
        %v444 = vrot.slane %v416, %v443
        %v445 = vlaneseq
        %v446 = vshrl.u32 %v445, 7
        %v447 = vsub.s32 0, %v446
        %v448 = vrot.slane %v424, %v447
        %v449 = vlaneseq
        %v450 = vshrl.u32 %v449, 7
        %v451 = vsub.s32 1, %v450
        %v452 = vrot.slane %v424, %v451
        %v453 = vlaneseq
        %v454 = vshrl.u32 %v453, 7
        %v455 = vsub.s32 0, %v454
        %v456 = vrot.slane %v426, %v455
        %v457 = vlaneseq
        %v458 = vshrl.u32 %v457, 7
        %v459 = vsub.s32 1, %v458
        %v460 = vrot.slane %v426, %v459
        %v461 = vlaneseq
        %v462 = vshrl.u32 %v461, 7
        %v463 = vsub.s32 0, %v462
        %v464 = vrot.slane %v409, %v463
        %v465 = vlaneseq
        %v466 = vshrl.u32 %v465, 7
        %v467 = vsub.s32 1, %v466
        %v468 = vrot.slane %v409, %v467
        %v469 = vlaneseq
        %v470 = vshrl.u32 %v469, 7
        %v471 = vsub.s32 0, %v470
        %v472 = vrot.slane %v423, %v471
        %v473 = vlaneseq
        %v474 = vshrl.u32 %v473, 7
        %v475 = vsub.s32 1, %v474
        %v476 = vrot.slane %v423, %v475
        %v477 = vlaneseq
        %v478 = vshrl.u32 %v477, 7
        %v479 = vsub.s32 0, %v478
        %v480 = vrot.slane %v425, %v479
        %v481 = vlaneseq
        %v482 = vshrl.u32 %v481, 7
        %v483 = vsub.s32 1, %v482
        %v484 = vrot.slane %v425, %v483
        %v485 = vlaneseq
        %v486 = vshrl.u32 %v485, 7
        %v487 = vsub.s32 0, %v486
        %v488 = vrot.slane %v427, %v487
        %v489 = vlaneseq
        %v490 = vshrl.u32 %v489, 7
        %v491 = vsub.s32 1, %v490
        %v492 = vrot.slane %v427, %v491
        %510 = vset.pattern.permute.xlu0 0
        %511 = vperm.xlu0 %510, %v428
        %v512 = vpop.permute.xlu0 %511
        %v514 = vmul.f32 %v432, %v512
        %v515 = vmul.f32 %v436, %v512
        %v516 = vmul.f32 %v440, %v512
        %v517 = vmul.f32 %v444, %v512
        %v518 = vmul.f32 %v448, %v512
        %v519 = vmul.f32 %v452, %v512
        %v520 = vmul.f32 %v456, %v512
        %v521 = vmul.f32 %v460, %v512
        %v522 = vmul.f32 %v464, %v512
        %v523 = vmul.f32 %v468, %v512
        %v524 = vmul.f32 %v472, %v512
        %v525 = vmul.f32 %v476, %v512
        %v526 = vmul.f32 %v480, %v512
        %v527 = vmul.f32 %v484, %v512
        %v528 = vmul.f32 %v488, %v512
        %v529 = vmul.f32 %v492, %v512
        %v530 = vadd.f32 %v375, %v514
        %v531 = vadd.f32 %v375, %v515
        %v532 = vadd.f32 %v375, %v516
        %v533 = vadd.f32 %v375, %v517
        %v534 = vadd.f32 %v375, %v518
        %v535 = vadd.f32 %v375, %v519
        %v536 = vadd.f32 %v375, %v520
        %v537 = vadd.f32 %v375, %v521
        %v538 = vadd.f32 %v375, %v522
        %v539 = vadd.f32 %v375, %v523
        %v540 = vadd.f32 %v375, %v524
        %v541 = vadd.f32 %v375, %v525
        %v542 = vadd.f32 %v375, %v526
        %v543 = vadd.f32 %v375, %v527
        %v544 = vadd.f32 %v375, %v528
        %v545 = vadd.f32 %v375, %v529
        %v548 = vcombine.low %v363, %v364
        %v549 = vcombine.high %v363, %v364
        %v551 = vunpack.c.l.s4 1966171168
        %v552 = vunpack.c.0.s8 %v551
        %v553 = vlaneseq
        %v554 = vshrl.u32 %v553, 7
        %v555 = vsub.s32 %v552, %v554
        %v556 = vrot.slane %v548, %v555
        %v558 = vunpack.c.l.s4 1966171168
        %v559 = vunpack.c.0.s8 %v558
        %v560 = vlaneseq
        %v561 = vshrl.u32 %v560, 7
        %v562 = vsub.s32 %v559, %v561
        %v563 = vrot.slane %v549, %v562
        %v564 = vcombine.high %v556, %v556
        %v565 = vcombine.high %v563, %v563
        %v567 = vunpack.c.l.s4 1966171168
        %v568 = vunpack.c.0.s8 %v567
        %v569 = vlaneseq
        %v570 = vshrl.u32 %v569, 7
        %v571 = vsub.s32 %v568, %v570
        %v572 = vrot.slane %v556, %v571
        %v574 = vunpack.c.l.s4 1966171168
        %v575 = vunpack.c.0.s8 %v574
        %v576 = vlaneseq
        %v577 = vshrl.u32 %v576, 7
        %v578 = vsub.s32 %v575, %v577
        %v579 = vrot.slane %v563, %v578
        %v581 = vunpack.c.l.s4 1966171168
        %v582 = vunpack.c.0.s8 %v581
        %v583 = vlaneseq
        %v584 = vshrl.u32 %v583, 7
        %v585 = vsub.s32 %v582, %v584
        %v586 = vrot.slane %v564, %v585
        %v588 = vunpack.c.l.s4 1966171168
        %v589 = vunpack.c.0.s8 %v588
        %v590 = vlaneseq
        %v591 = vshrl.u32 %v590, 7
        %v592 = vsub.s32 %v589, %v591
        %v593 = vrot.slane %v565, %v592
        %v594 = vcombine.high %v572, %v572
        %v595 = vcombine.high %v579, %v579
        %v596 = vcombine.high %v586, %v586
        %v597 = vcombine.high %v593, %v593
        %v598 = vld [vmem:[%s336] sm:$0xff]
        %v599 = vlaneseq
        %v600 = vshrl.u32 %v599, 7
        %v601 = vsub.s32 0, %v600
        %v602 = vrot.slane %v572, %v601
        %v603 = vlaneseq
        %v604 = vshrl.u32 %v603, 7
        %v605 = vsub.s32 1, %v604
        %v606 = vrot.slane %v572, %v605
        %v607 = vlaneseq
        %v608 = vshrl.u32 %v607, 7
        %v609 = vsub.s32 0, %v608
        %v610 = vrot.slane %v586, %v609
        %v611 = vlaneseq
        %v612 = vshrl.u32 %v611, 7
        %v613 = vsub.s32 1, %v612
        %v614 = vrot.slane %v586, %v613
        %v615 = vlaneseq
        %v616 = vshrl.u32 %v615, 7
        %v617 = vsub.s32 0, %v616
        %v618 = vrot.slane %v594, %v617
        %v619 = vlaneseq
        %v620 = vshrl.u32 %v619, 7
        %v621 = vsub.s32 1, %v620
        %v622 = vrot.slane %v594, %v621
        %v623 = vlaneseq
        %v624 = vshrl.u32 %v623, 7
        %v625 = vsub.s32 0, %v624
        %v626 = vrot.slane %v596, %v625
        %v627 = vlaneseq
        %v628 = vshrl.u32 %v627, 7
        %v629 = vsub.s32 1, %v628
        %v630 = vrot.slane %v596, %v629
        %v631 = vlaneseq
        %v632 = vshrl.u32 %v631, 7
        %v633 = vsub.s32 0, %v632
        %v634 = vrot.slane %v579, %v633
        %v635 = vlaneseq
        %v636 = vshrl.u32 %v635, 7
        %v637 = vsub.s32 1, %v636
        %v638 = vrot.slane %v579, %v637
        %v639 = vlaneseq
        %v640 = vshrl.u32 %v639, 7
        %v641 = vsub.s32 0, %v640
        %v642 = vrot.slane %v593, %v641
        %v643 = vlaneseq
        %v644 = vshrl.u32 %v643, 7
        %v645 = vsub.s32 1, %v644
        %v646 = vrot.slane %v593, %v645
        %v647 = vlaneseq
        %v648 = vshrl.u32 %v647, 7
        %v649 = vsub.s32 0, %v648
        %v650 = vrot.slane %v595, %v649
        %v651 = vlaneseq
        %v652 = vshrl.u32 %v651, 7
        %v653 = vsub.s32 1, %v652
        %v654 = vrot.slane %v595, %v653
        %v655 = vlaneseq
        %v656 = vshrl.u32 %v655, 7
        %v657 = vsub.s32 0, %v656
        %v658 = vrot.slane %v597, %v657
        %v659 = vlaneseq
        %v660 = vshrl.u32 %v659, 7
        %v661 = vsub.s32 1, %v660
        %v662 = vrot.slane %v597, %v661
        %680 = vset.pattern.permute.xlu0 1
        %681 = vperm.xlu0 %680, %v598
        %v682 = vpop.permute.xlu0 %681
        %v684 = vmul.f32 %v602, %v682
        %v685 = vmul.f32 %v606, %v682
        %v686 = vmul.f32 %v610, %v682
        %v687 = vmul.f32 %v614, %v682
        %v688 = vmul.f32 %v618, %v682
        %v689 = vmul.f32 %v622, %v682
        %v690 = vmul.f32 %v626, %v682
        %v691 = vmul.f32 %v630, %v682
        %v692 = vmul.f32 %v634, %v682
        %v693 = vmul.f32 %v638, %v682
        %v694 = vmul.f32 %v642, %v682
        %v695 = vmul.f32 %v646, %v682
        %v696 = vmul.f32 %v650, %v682
        %v697 = vmul.f32 %v654, %v682
        %v698 = vmul.f32 %v658, %v682
        %v699 = vmul.f32 %v662, %v682
        %v700 = vadd.f32 %v530, %v684
        %v701 = vadd.f32 %v531, %v685
        %v702 = vadd.f32 %v532, %v686
        %v703 = vadd.f32 %v533, %v687
        %v704 = vadd.f32 %v534, %v688
        %v705 = vadd.f32 %v535, %v689
        %v706 = vadd.f32 %v536, %v690
        %v707 = vadd.f32 %v537, %v691
        %v708 = vadd.f32 %v538, %v692
        %v709 = vadd.f32 %v539, %v693
        %v710 = vadd.f32 %v540, %v694
        %v711 = vadd.f32 %v541, %v695
        %v712 = vadd.f32 %v542, %v696
        %v713 = vadd.f32 %v543, %v697
        %v714 = vadd.f32 %v544, %v698
        %v715 = vadd.f32 %v545, %v699
        %v718 = vcombine.low %v367, %v368
        %v719 = vcombine.high %v367, %v368
        %v721 = vunpack.c.l.s4 1966171168
        %v722 = vunpack.c.0.s8 %v721
        %v723 = vlaneseq
        %v724 = vshrl.u32 %v723, 7
        %v725 = vsub.s32 %v722, %v724
        %v726 = vrot.slane %v718, %v725
        %v728 = vunpack.c.l.s4 1966171168
        %v729 = vunpack.c.0.s8 %v728
        %v730 = vlaneseq
        %v731 = vshrl.u32 %v730, 7
        %v732 = vsub.s32 %v729, %v731
        %v733 = vrot.slane %v719, %v732
        %v734 = vcombine.high %v726, %v726
        %v735 = vcombine.high %v733, %v733
        %v737 = vunpack.c.l.s4 1966171168
        %v738 = vunpack.c.0.s8 %v737
        %v739 = vlaneseq
        %v740 = vshrl.u32 %v739, 7
        %v741 = vsub.s32 %v738, %v740
        %v742 = vrot.slane %v726, %v741
        %v744 = vunpack.c.l.s4 1966171168
        %v745 = vunpack.c.0.s8 %v744
        %v746 = vlaneseq
        %v747 = vshrl.u32 %v746, 7
        %v748 = vsub.s32 %v745, %v747
        %v749 = vrot.slane %v733, %v748
        %v751 = vunpack.c.l.s4 1966171168
        %v752 = vunpack.c.0.s8 %v751
        %v753 = vlaneseq
        %v754 = vshrl.u32 %v753, 7
        %v755 = vsub.s32 %v752, %v754
        %v756 = vrot.slane %v734, %v755
        %v758 = vunpack.c.l.s4 1966171168
        %v759 = vunpack.c.0.s8 %v758
        %v760 = vlaneseq
        %v761 = vshrl.u32 %v760, 7
        %v762 = vsub.s32 %v759, %v761
        %v763 = vrot.slane %v735, %v762
        %v764 = vcombine.high %v742, %v742
        %v765 = vcombine.high %v749, %v749
        %v766 = vcombine.high %v756, %v756
        %v767 = vcombine.high %v763, %v763
        %v768 = vld [vmem:[%s336] sm:$0xff]
        %v769 = vlaneseq
        %v770 = vshrl.u32 %v769, 7
        %v771 = vsub.s32 0, %v770
        %v772 = vrot.slane %v742, %v771
        %v773 = vlaneseq
        %v774 = vshrl.u32 %v773, 7
        %v775 = vsub.s32 1, %v774
        %v776 = vrot.slane %v742, %v775
        %v777 = vlaneseq
        %v778 = vshrl.u32 %v777, 7
        %v779 = vsub.s32 0, %v778
        %v780 = vrot.slane %v756, %v779
        %v781 = vlaneseq
        %v782 = vshrl.u32 %v781, 7
        %v783 = vsub.s32 1, %v782
        %v784 = vrot.slane %v756, %v783
        %v785 = vlaneseq
        %v786 = vshrl.u32 %v785, 7
        %v787 = vsub.s32 0, %v786
        %v788 = vrot.slane %v764, %v787
        %v789 = vlaneseq
        %v790 = vshrl.u32 %v789, 7
        %v791 = vsub.s32 1, %v790
        %v792 = vrot.slane %v764, %v791
        %v793 = vlaneseq
        %v794 = vshrl.u32 %v793, 7
        %v795 = vsub.s32 0, %v794
        %v796 = vrot.slane %v766, %v795
        %v797 = vlaneseq
        %v798 = vshrl.u32 %v797, 7
        %v799 = vsub.s32 1, %v798
        %v800 = vrot.slane %v766, %v799
        %v801 = vlaneseq
        %v802 = vshrl.u32 %v801, 7
        %v803 = vsub.s32 0, %v802
        %v804 = vrot.slane %v749, %v803
        %v805 = vlaneseq
        %v806 = vshrl.u32 %v805, 7
        %v807 = vsub.s32 1, %v806
        %v808 = vrot.slane %v749, %v807
        %v809 = vlaneseq
        %v810 = vshrl.u32 %v809, 7
        %v811 = vsub.s32 0, %v810
        %v812 = vrot.slane %v763, %v811
        %v813 = vlaneseq
        %v814 = vshrl.u32 %v813, 7
        %v815 = vsub.s32 1, %v814
        %v816 = vrot.slane %v763, %v815
        %v817 = vlaneseq
        %v818 = vshrl.u32 %v817, 7
        %v819 = vsub.s32 0, %v818
        %v820 = vrot.slane %v765, %v819
        %v821 = vlaneseq
        %v822 = vshrl.u32 %v821, 7
        %v823 = vsub.s32 1, %v822
        %v824 = vrot.slane %v765, %v823
        %v825 = vlaneseq
        %v826 = vshrl.u32 %v825, 7
        %v827 = vsub.s32 0, %v826
        %v828 = vrot.slane %v767, %v827
        %v829 = vlaneseq
        %v830 = vshrl.u32 %v829, 7
        %v831 = vsub.s32 1, %v830
        %v832 = vrot.slane %v767, %v831
        %850 = vset.pattern.permute.xlu0 2
        %851 = vperm.xlu0 %850, %v768
        %v852 = vpop.permute.xlu0 %851
        %v854 = vmul.f32 %v772, %v852
        %v855 = vmul.f32 %v776, %v852
        %v856 = vmul.f32 %v780, %v852
        %v857 = vmul.f32 %v784, %v852
        %v858 = vmul.f32 %v788, %v852
        %v859 = vmul.f32 %v792, %v852
        %v860 = vmul.f32 %v796, %v852
        %v861 = vmul.f32 %v800, %v852
        %v862 = vmul.f32 %v804, %v852
        %v863 = vmul.f32 %v808, %v852
        %v864 = vmul.f32 %v812, %v852
        %v865 = vmul.f32 %v816, %v852
        %v866 = vmul.f32 %v820, %v852
        %v867 = vmul.f32 %v824, %v852
        %v868 = vmul.f32 %v828, %v852
        %v869 = vmul.f32 %v832, %v852
        %v870 = vadd.f32 %v700, %v854
        %v871 = vadd.f32 %v701, %v855
        %v872 = vadd.f32 %v702, %v856
        %v873 = vadd.f32 %v703, %v857
        %v874 = vadd.f32 %v704, %v858
        %v875 = vadd.f32 %v705, %v859
        %v876 = vadd.f32 %v706, %v860
        %v877 = vadd.f32 %v707, %v861
        %v878 = vadd.f32 %v708, %v862
        %v879 = vadd.f32 %v709, %v863
        %v880 = vadd.f32 %v710, %v864
        %v881 = vadd.f32 %v711, %v865
        %v882 = vadd.f32 %v712, %v866
        %v883 = vadd.f32 %v713, %v867
        %v884 = vadd.f32 %v714, %v868
        %v885 = vadd.f32 %v715, %v869
        %v886 = vmax.f32 %v870, 0.0
        %v887 = vmax.f32 %v871, 0.0
        %v888 = vmax.f32 %v872, 0.0
        %v889 = vmax.f32 %v873, 0.0
        %v890 = vmax.f32 %v874, 0.0
        %v891 = vmax.f32 %v875, 0.0
        %v892 = vmax.f32 %v876, 0.0
        %v893 = vmax.f32 %v877, 0.0
        %v894 = vmax.f32 %v878, 0.0
        %v895 = vmax.f32 %v879, 0.0
        %v896 = vmax.f32 %v880, 0.0
        %v897 = vmax.f32 %v881, 0.0
        %v898 = vmax.f32 %v882, 0.0
        %v899 = vmax.f32 %v883, 0.0
        %v900 = vmax.f32 %v884, 0.0
        %v901 = vmax.f32 %v885, 0.0
        %v902 = vadd.f32 %v886, %v887
        %903 = vadd.xlane.f32.xlu0 %v902
        %v904 = vpop.xlane.xlu0 %903
        %v905 = vadd.f32 %v888, %v889
        %906 = vadd.xlane.f32.xlu0 %v905
        %v907 = vpop.xlane.xlu0 %906
        %v908 = vadd.f32 %v890, %v891
        %909 = vadd.xlane.f32.xlu0 %v908
        %v910 = vpop.xlane.xlu0 %909
        %v911 = vadd.f32 %v892, %v893
        %912 = vadd.xlane.f32.xlu0 %v911
        %v913 = vpop.xlane.xlu0 %912
        %v914 = vadd.f32 %v894, %v895
        %915 = vadd.xlane.f32.xlu0 %v914
        %v916 = vpop.xlane.xlu0 %915
        %v917 = vadd.f32 %v896, %v897
        %918 = vadd.xlane.f32.xlu0 %v917
        %v919 = vpop.xlane.xlu0 %918
        %v920 = vadd.f32 %v898, %v899
        %921 = vadd.xlane.f32.xlu0 %v920
        %v922 = vpop.xlane.xlu0 %921
        %v923 = vadd.f32 %v900, %v901
        %924 = vadd.xlane.f32.xlu0 %v923
        %v925 = vpop.xlane.xlu0 %924
        %v926 = vld [vmem:[%s341 + $0x8] sm:$0xff]
        %928 = vset.pattern.permute.xlu0 0
        %929 = vperm.xlu0 %928, %v926
        %v930 = vpop.permute.xlu0 %929
        %v932 = vadd.f32 %v930, 0.0
        %v933 = vld [vmem:[%s336 + $0x8] sm:$0xff]
        %935 = vset.pattern.permute.xlu0 0
        %936 = vperm.xlu0 %935, %v933
        %v937 = vpop.permute.xlu0 %936
        %v939 = vmul.f32 %v432, %v937
        %v940 = vmul.f32 %v436, %v937
        %v941 = vmul.f32 %v440, %v937
        %v942 = vmul.f32 %v444, %v937
        %v943 = vmul.f32 %v448, %v937
        %v944 = vmul.f32 %v452, %v937
        %v945 = vmul.f32 %v456, %v937
        %v946 = vmul.f32 %v460, %v937
        %v947 = vmul.f32 %v464, %v937
        %v948 = vmul.f32 %v468, %v937
        %v949 = vmul.f32 %v472, %v937
        %v950 = vmul.f32 %v476, %v937
        %v951 = vmul.f32 %v480, %v937
        %v952 = vmul.f32 %v484, %v937
        %v953 = vmul.f32 %v488, %v937
        %v954 = vmul.f32 %v492, %v937
        %v955 = vadd.f32 %v932, %v939
        %v956 = vadd.f32 %v932, %v940
        %v957 = vadd.f32 %v932, %v941
        %v958 = vadd.f32 %v932, %v942
        %v959 = vadd.f32 %v932, %v943
        %v960 = vadd.f32 %v932, %v944
        %v961 = vadd.f32 %v932, %v945
        %v962 = vadd.f32 %v932, %v946
        %v963 = vadd.f32 %v932, %v947
        %v964 = vadd.f32 %v932, %v948
        %v965 = vadd.f32 %v932, %v949
        %v966 = vadd.f32 %v932, %v950
        %v967 = vadd.f32 %v932, %v951
        %v968 = vadd.f32 %v932, %v952
        %v969 = vadd.f32 %v932, %v953
        %v970 = vadd.f32 %v932, %v954
        %971 = vset.pattern.permute.xlu0 1
        %972 = vperm.xlu0 %971, %v933
        %v973 = vpop.permute.xlu0 %972
        %v975 = vmul.f32 %v602, %v973
        %v976 = vmul.f32 %v606, %v973
        %v977 = vmul.f32 %v610, %v973
        %v978 = vmul.f32 %v614, %v973
        %v979 = vmul.f32 %v618, %v973
        %v980 = vmul.f32 %v622, %v973
        %v981 = vmul.f32 %v626, %v973
        %v982 = vmul.f32 %v630, %v973
        %v983 = vmul.f32 %v634, %v973
        %v984 = vmul.f32 %v638, %v973
        %v985 = vmul.f32 %v642, %v973
        %v986 = vmul.f32 %v646, %v973
        %v987 = vmul.f32 %v650, %v973
        %v988 = vmul.f32 %v654, %v973
        %v989 = vmul.f32 %v658, %v973
        %v990 = vmul.f32 %v662, %v973
        %v991 = vadd.f32 %v955, %v975
        %v992 = vadd.f32 %v956, %v976
        %v993 = vadd.f32 %v957, %v977
        %v994 = vadd.f32 %v958, %v978
        %v995 = vadd.f32 %v959, %v979
        %v996 = vadd.f32 %v960, %v980
        %v997 = vadd.f32 %v961, %v981
        %v998 = vadd.f32 %v962, %v982
        %v999 = vadd.f32 %v963, %v983
        %v1000 = vadd.f32 %v964, %v984
        %v1001 = vadd.f32 %v965, %v985
        %v1002 = vadd.f32 %v966, %v986
        %v1003 = vadd.f32 %v967, %v987
        %v1004 = vadd.f32 %v968, %v988
        %v1005 = vadd.f32 %v969, %v989
        %v1006 = vadd.f32 %v970, %v990
        %1007 = vset.pattern.permute.xlu0 2
        %1008 = vperm.xlu0 %1007, %v933
        %v1009 = vpop.permute.xlu0 %1008
        %v1011 = vmul.f32 %v772, %v1009
        %v1012 = vmul.f32 %v776, %v1009
        %v1013 = vmul.f32 %v780, %v1009
        %v1014 = vmul.f32 %v784, %v1009
        %v1015 = vmul.f32 %v788, %v1009
        %v1016 = vmul.f32 %v792, %v1009
        %v1017 = vmul.f32 %v796, %v1009
        %v1018 = vmul.f32 %v800, %v1009
        %v1019 = vmul.f32 %v804, %v1009
        %v1020 = vmul.f32 %v808, %v1009
        %v1021 = vmul.f32 %v812, %v1009
        %v1022 = vmul.f32 %v816, %v1009
        %v1023 = vmul.f32 %v820, %v1009
        %v1024 = vmul.f32 %v824, %v1009
        %v1025 = vmul.f32 %v828, %v1009
        %v1026 = vmul.f32 %v832, %v1009
        %v1027 = vadd.f32 %v991, %v1011
        %v1028 = vadd.f32 %v992, %v1012
        %v1029 = vadd.f32 %v993, %v1013
        %v1030 = vadd.f32 %v994, %v1014
        %v1031 = vadd.f32 %v995, %v1015
        %v1032 = vadd.f32 %v996, %v1016
        %v1033 = vadd.f32 %v997, %v1017
        %v1034 = vadd.f32 %v998, %v1018
        %v1035 = vadd.f32 %v999, %v1019
        %v1036 = vadd.f32 %v1000, %v1020
        %v1037 = vadd.f32 %v1001, %v1021
        %v1038 = vadd.f32 %v1002, %v1022
        %v1039 = vadd.f32 %v1003, %v1023
        %v1040 = vadd.f32 %v1004, %v1024
        %v1041 = vadd.f32 %v1005, %v1025
        %v1042 = vadd.f32 %v1006, %v1026
        %v1043 = vmax.f32 %v1027, 0.0
        %v1044 = vmax.f32 %v1028, 0.0
        %v1045 = vmax.f32 %v1029, 0.0
        %v1046 = vmax.f32 %v1030, 0.0
        %v1047 = vmax.f32 %v1031, 0.0
        %v1048 = vmax.f32 %v1032, 0.0
        %v1049 = vmax.f32 %v1033, 0.0
        %v1050 = vmax.f32 %v1034, 0.0
        %v1051 = vmax.f32 %v1035, 0.0
        %v1052 = vmax.f32 %v1036, 0.0
        %v1053 = vmax.f32 %v1037, 0.0
        %v1054 = vmax.f32 %v1038, 0.0
        %v1055 = vmax.f32 %v1039, 0.0
        %v1056 = vmax.f32 %v1040, 0.0
        %v1057 = vmax.f32 %v1041, 0.0
        %v1058 = vmax.f32 %v1042, 0.0
        %v1059 = vadd.f32 %v1043, %v1044
        %1060 = vadd.xlane.f32.xlu0 %v1059
        %v1061 = vpop.xlane.xlu0 %1060
        %v1062 = vadd.f32 %v1045, %v1046
        %1063 = vadd.xlane.f32.xlu0 %v1062
        %v1064 = vpop.xlane.xlu0 %1063
        %v1065 = vadd.f32 %v1047, %v1048
        %1066 = vadd.xlane.f32.xlu0 %v1065
        %v1067 = vpop.xlane.xlu0 %1066
        %v1068 = vadd.f32 %v1049, %v1050
        %1069 = vadd.xlane.f32.xlu0 %v1068
        %v1070 = vpop.xlane.xlu0 %1069
        %v1071 = vadd.f32 %v1051, %v1052
        %1072 = vadd.xlane.f32.xlu0 %v1071
        %v1073 = vpop.xlane.xlu0 %1072
        %v1074 = vadd.f32 %v1053, %v1054
        %1075 = vadd.xlane.f32.xlu0 %v1074
        %v1076 = vpop.xlane.xlu0 %1075
        %v1077 = vadd.f32 %v1055, %v1056
        %1078 = vadd.xlane.f32.xlu0 %v1077
        %v1079 = vpop.xlane.xlu0 %1078
        %v1080 = vadd.f32 %v1057, %v1058
        %1081 = vadd.xlane.f32.xlu0 %v1080
        %v1082 = vpop.xlane.xlu0 %1081
        %v1083 = vld [vmem:[%s341 + $0x10] sm:$0xff]
        %1085 = vset.pattern.permute.xlu0 0
        %1086 = vperm.xlu0 %1085, %v1083
        %v1087 = vpop.permute.xlu0 %1086
        %v1089 = vadd.f32 %v1087, 0.0
        %v1090 = vld [vmem:[%s336 + $0x10] sm:$0xff]
        %1092 = vset.pattern.permute.xlu0 0
        %1093 = vperm.xlu0 %1092, %v1090
        %v1094 = vpop.permute.xlu0 %1093
        %v1096 = vmul.f32 %v432, %v1094
        %v1097 = vmul.f32 %v436, %v1094
        %v1098 = vmul.f32 %v440, %v1094
        %v1099 = vmul.f32 %v444, %v1094
        %v1100 = vmul.f32 %v448, %v1094
        %v1101 = vmul.f32 %v452, %v1094
        %v1102 = vmul.f32 %v456, %v1094
        %v1103 = vmul.f32 %v460, %v1094
        %v1104 = vmul.f32 %v464, %v1094
        %v1105 = vmul.f32 %v468, %v1094
        %v1106 = vmul.f32 %v472, %v1094
        %v1107 = vmul.f32 %v476, %v1094
        %v1108 = vmul.f32 %v480, %v1094
        %v1109 = vmul.f32 %v484, %v1094
        %v1110 = vmul.f32 %v488, %v1094
        %v1111 = vmul.f32 %v492, %v1094
        %v1112 = vadd.f32 %v1089, %v1096
        %v1113 = vadd.f32 %v1089, %v1097
        %v1114 = vadd.f32 %v1089, %v1098
        %v1115 = vadd.f32 %v1089, %v1099
        %v1116 = vadd.f32 %v1089, %v1100
        %v1117 = vadd.f32 %v1089, %v1101
        %v1118 = vadd.f32 %v1089, %v1102
        %v1119 = vadd.f32 %v1089, %v1103
        %v1120 = vadd.f32 %v1089, %v1104
        %v1121 = vadd.f32 %v1089, %v1105
        %v1122 = vadd.f32 %v1089, %v1106
        %v1123 = vadd.f32 %v1089, %v1107
        %v1124 = vadd.f32 %v1089, %v1108
        %v1125 = vadd.f32 %v1089, %v1109
        %v1126 = vadd.f32 %v1089, %v1110
        %v1127 = vadd.f32 %v1089, %v1111
        %1128 = vset.pattern.permute.xlu0 1
        %1129 = vperm.xlu0 %1128, %v1090
        %v1130 = vpop.permute.xlu0 %1129
        %v1132 = vmul.f32 %v602, %v1130
        %v1133 = vmul.f32 %v606, %v1130
        %v1134 = vmul.f32 %v610, %v1130
        %v1135 = vmul.f32 %v614, %v1130
        %v1136 = vmul.f32 %v618, %v1130
        %v1137 = vmul.f32 %v622, %v1130
        %v1138 = vmul.f32 %v626, %v1130
        %v1139 = vmul.f32 %v630, %v1130
        %v1140 = vmul.f32 %v634, %v1130
        %v1141 = vmul.f32 %v638, %v1130
        %v1142 = vmul.f32 %v642, %v1130
        %v1143 = vmul.f32 %v646, %v1130
        %v1144 = vmul.f32 %v650, %v1130
        %v1145 = vmul.f32 %v654, %v1130
        %v1146 = vmul.f32 %v658, %v1130
        %v1147 = vmul.f32 %v662, %v1130
        %v1148 = vadd.f32 %v1112, %v1132
        %v1149 = vadd.f32 %v1113, %v1133
        %v1150 = vadd.f32 %v1114, %v1134
        %v1151 = vadd.f32 %v1115, %v1135
        %v1152 = vadd.f32 %v1116, %v1136
        %v1153 = vadd.f32 %v1117, %v1137
        %v1154 = vadd.f32 %v1118, %v1138
        %v1155 = vadd.f32 %v1119, %v1139
        %v1156 = vadd.f32 %v1120, %v1140
        %v1157 = vadd.f32 %v1121, %v1141
        %v1158 = vadd.f32 %v1122, %v1142
        %v1159 = vadd.f32 %v1123, %v1143
        %v1160 = vadd.f32 %v1124, %v1144
        %v1161 = vadd.f32 %v1125, %v1145
        %v1162 = vadd.f32 %v1126, %v1146
        %v1163 = vadd.f32 %v1127, %v1147
        %1164 = vset.pattern.permute.xlu0 2
        %1165 = vperm.xlu0 %1164, %v1090
        %v1166 = vpop.permute.xlu0 %1165
        %v1168 = vmul.f32 %v772, %v1166
        %v1169 = vmul.f32 %v776, %v1166
        %v1170 = vmul.f32 %v780, %v1166
        %v1171 = vmul.f32 %v784, %v1166
        %v1172 = vmul.f32 %v788, %v1166
        %v1173 = vmul.f32 %v792, %v1166
        %v1174 = vmul.f32 %v796, %v1166
        %v1175 = vmul.f32 %v800, %v1166
        %v1176 = vmul.f32 %v804, %v1166
        %v1177 = vmul.f32 %v808, %v1166
        %v1178 = vmul.f32 %v812, %v1166
        %v1179 = vmul.f32 %v816, %v1166
        %v1180 = vmul.f32 %v820, %v1166
        %v1181 = vmul.f32 %v824, %v1166
        %v1182 = vmul.f32 %v828, %v1166
        %v1183 = vmul.f32 %v832, %v1166
        %v1184 = vadd.f32 %v1148, %v1168
        %v1185 = vadd.f32 %v1149, %v1169
        %v1186 = vadd.f32 %v1150, %v1170
        %v1187 = vadd.f32 %v1151, %v1171
        %v1188 = vadd.f32 %v1152, %v1172
        %v1189 = vadd.f32 %v1153, %v1173
        %v1190 = vadd.f32 %v1154, %v1174
        %v1191 = vadd.f32 %v1155, %v1175
        %v1192 = vadd.f32 %v1156, %v1176
        %v1193 = vadd.f32 %v1157, %v1177
        %v1194 = vadd.f32 %v1158, %v1178
        %v1195 = vadd.f32 %v1159, %v1179
        %v1196 = vadd.f32 %v1160, %v1180
        %v1197 = vadd.f32 %v1161, %v1181
        %v1198 = vadd.f32 %v1162, %v1182
        %v1199 = vadd.f32 %v1163, %v1183
        %v1200 = vmax.f32 %v1184, 0.0
        %v1201 = vmax.f32 %v1185, 0.0
        %v1202 = vmax.f32 %v1186, 0.0
        %v1203 = vmax.f32 %v1187, 0.0
        %v1204 = vmax.f32 %v1188, 0.0
        %v1205 = vmax.f32 %v1189, 0.0
        %v1206 = vmax.f32 %v1190, 0.0
        %v1207 = vmax.f32 %v1191, 0.0
        %v1208 = vmax.f32 %v1192, 0.0
        %v1209 = vmax.f32 %v1193, 0.0
        %v1210 = vmax.f32 %v1194, 0.0
        %v1211 = vmax.f32 %v1195, 0.0
        %v1212 = vmax.f32 %v1196, 0.0
        %v1213 = vmax.f32 %v1197, 0.0
        %v1214 = vmax.f32 %v1198, 0.0
        %v1215 = vmax.f32 %v1199, 0.0
        %v1216 = vadd.f32 %v1200, %v1201
        %1217 = vadd.xlane.f32.xlu0 %v1216
        %v1218 = vpop.xlane.xlu0 %1217
        %v1219 = vadd.f32 %v1202, %v1203
        %1220 = vadd.xlane.f32.xlu0 %v1219
        %v1221 = vpop.xlane.xlu0 %1220
        %v1222 = vadd.f32 %v1204, %v1205
        %1223 = vadd.xlane.f32.xlu0 %v1222
        %v1224 = vpop.xlane.xlu0 %1223
        %v1225 = vadd.f32 %v1206, %v1207
        %1226 = vadd.xlane.f32.xlu0 %v1225
        %v1227 = vpop.xlane.xlu0 %1226
        %v1228 = vadd.f32 %v1208, %v1209
        %1229 = vadd.xlane.f32.xlu0 %v1228
        %v1230 = vpop.xlane.xlu0 %1229
        %v1231 = vadd.f32 %v1210, %v1211
        %1232 = vadd.xlane.f32.xlu0 %v1231
        %v1233 = vpop.xlane.xlu0 %1232
        %v1234 = vadd.f32 %v1212, %v1213
        %1235 = vadd.xlane.f32.xlu0 %v1234
        %v1236 = vpop.xlane.xlu0 %1235
        %v1237 = vadd.f32 %v1214, %v1215
        %1238 = vadd.xlane.f32.xlu0 %v1237
        %v1239 = vpop.xlane.xlu0 %1238
        %v1240 = vld [vmem:[%s341 + $0x18] sm:$0xff]
        %1242 = vset.pattern.permute.xlu0 0
        %1243 = vperm.xlu0 %1242, %v1240
        %v1244 = vpop.permute.xlu0 %1243
        %v1246 = vadd.f32 %v1244, 0.0
        %v1247 = vld [vmem:[%s336 + $0x18] sm:$0xff]
        %1249 = vset.pattern.permute.xlu0 0
        %1250 = vperm.xlu0 %1249, %v1247
        %v1251 = vpop.permute.xlu0 %1250
        %v1253 = vmul.f32 %v432, %v1251
        %v1254 = vmul.f32 %v436, %v1251
        %v1255 = vmul.f32 %v440, %v1251
        %v1256 = vmul.f32 %v444, %v1251
        %v1257 = vmul.f32 %v448, %v1251
        %v1258 = vmul.f32 %v452, %v1251
        %v1259 = vmul.f32 %v456, %v1251
        %v1260 = vmul.f32 %v460, %v1251
        %v1261 = vmul.f32 %v464, %v1251
        %v1262 = vmul.f32 %v468, %v1251
        %v1263 = vmul.f32 %v472, %v1251
        %v1264 = vmul.f32 %v476, %v1251
        %v1265 = vmul.f32 %v480, %v1251
        %v1266 = vmul.f32 %v484, %v1251
        %v1267 = vmul.f32 %v488, %v1251
        %v1268 = vmul.f32 %v492, %v1251
        %v1269 = vadd.f32 %v1246, %v1253
        %v1270 = vadd.f32 %v1246, %v1254
        %v1271 = vadd.f32 %v1246, %v1255
        %v1272 = vadd.f32 %v1246, %v1256
        %v1273 = vadd.f32 %v1246, %v1257
        %v1274 = vadd.f32 %v1246, %v1258
        %v1275 = vadd.f32 %v1246, %v1259
        %v1276 = vadd.f32 %v1246, %v1260
        %v1277 = vadd.f32 %v1246, %v1261
        %v1278 = vadd.f32 %v1246, %v1262
        %v1279 = vadd.f32 %v1246, %v1263
        %v1280 = vadd.f32 %v1246, %v1264
        %v1281 = vadd.f32 %v1246, %v1265
        %v1282 = vadd.f32 %v1246, %v1266
        %v1283 = vadd.f32 %v1246, %v1267
        %v1284 = vadd.f32 %v1246, %v1268
        %1285 = vset.pattern.permute.xlu0 1
        %1286 = vperm.xlu0 %1285, %v1247
        %v1287 = vpop.permute.xlu0 %1286
        %v1289 = vmul.f32 %v602, %v1287
        %v1290 = vmul.f32 %v606, %v1287
        %v1291 = vmul.f32 %v610, %v1287
        %v1292 = vmul.f32 %v614, %v1287
        %v1293 = vmul.f32 %v618, %v1287
        %v1294 = vmul.f32 %v622, %v1287
        %v1295 = vmul.f32 %v626, %v1287
        %v1296 = vmul.f32 %v630, %v1287
        %v1297 = vmul.f32 %v634, %v1287
        %v1298 = vmul.f32 %v638, %v1287
        %v1299 = vmul.f32 %v642, %v1287
        %v1300 = vmul.f32 %v646, %v1287
        %v1301 = vmul.f32 %v650, %v1287
        %v1302 = vmul.f32 %v654, %v1287
        %v1303 = vmul.f32 %v658, %v1287
        %v1304 = vmul.f32 %v662, %v1287
        %v1305 = vadd.f32 %v1269, %v1289
        %v1306 = vadd.f32 %v1270, %v1290
        %v1307 = vadd.f32 %v1271, %v1291
        %v1308 = vadd.f32 %v1272, %v1292
        %v1309 = vadd.f32 %v1273, %v1293
        %v1310 = vadd.f32 %v1274, %v1294
        %v1311 = vadd.f32 %v1275, %v1295
        %v1312 = vadd.f32 %v1276, %v1296
        %v1313 = vadd.f32 %v1277, %v1297
        %v1314 = vadd.f32 %v1278, %v1298
        %v1315 = vadd.f32 %v1279, %v1299
        %v1316 = vadd.f32 %v1280, %v1300
        %v1317 = vadd.f32 %v1281, %v1301
        %v1318 = vadd.f32 %v1282, %v1302
        %v1319 = vadd.f32 %v1283, %v1303
        %v1320 = vadd.f32 %v1284, %v1304
        %1321 = vset.pattern.permute.xlu0 2
        %1322 = vperm.xlu0 %1321, %v1247
        %v1323 = vpop.permute.xlu0 %1322
        %v1325 = vmul.f32 %v772, %v1323
        %v1326 = vmul.f32 %v776, %v1323
        %v1327 = vmul.f32 %v780, %v1323
        %v1328 = vmul.f32 %v784, %v1323
        %v1329 = vmul.f32 %v788, %v1323
        %v1330 = vmul.f32 %v792, %v1323
        %v1331 = vmul.f32 %v796, %v1323
        %v1332 = vmul.f32 %v800, %v1323
        %v1333 = vmul.f32 %v804, %v1323
        %v1334 = vmul.f32 %v808, %v1323
        %v1335 = vmul.f32 %v812, %v1323
        %v1336 = vmul.f32 %v816, %v1323
        %v1337 = vmul.f32 %v820, %v1323
        %v1338 = vmul.f32 %v824, %v1323
        %v1339 = vmul.f32 %v828, %v1323
        %v1340 = vmul.f32 %v832, %v1323
        %v1341 = vadd.f32 %v1305, %v1325
        %v1342 = vadd.f32 %v1306, %v1326
        %v1343 = vadd.f32 %v1307, %v1327
        %v1344 = vadd.f32 %v1308, %v1328
        %v1345 = vadd.f32 %v1309, %v1329
        %v1346 = vadd.f32 %v1310, %v1330
        %v1347 = vadd.f32 %v1311, %v1331
        %v1348 = vadd.f32 %v1312, %v1332
        %v1349 = vadd.f32 %v1313, %v1333
        %v1350 = vadd.f32 %v1314, %v1334
        %v1351 = vadd.f32 %v1315, %v1335
        %v1352 = vadd.f32 %v1316, %v1336
        %v1353 = vadd.f32 %v1317, %v1337
        %v1354 = vadd.f32 %v1318, %v1338
        %v1355 = vadd.f32 %v1319, %v1339
        %v1356 = vadd.f32 %v1320, %v1340
        %v1357 = vmax.f32 %v1341, 0.0
        %v1358 = vmax.f32 %v1342, 0.0
        %v1359 = vmax.f32 %v1343, 0.0
        %v1360 = vmax.f32 %v1344, 0.0
        %v1361 = vmax.f32 %v1345, 0.0
        %v1362 = vmax.f32 %v1346, 0.0
        %v1363 = vmax.f32 %v1347, 0.0
        %v1364 = vmax.f32 %v1348, 0.0
        %v1365 = vmax.f32 %v1349, 0.0
        %v1366 = vmax.f32 %v1350, 0.0
        %v1367 = vmax.f32 %v1351, 0.0
        %v1368 = vmax.f32 %v1352, 0.0
        %v1369 = vmax.f32 %v1353, 0.0
        %v1370 = vmax.f32 %v1354, 0.0
        %v1371 = vmax.f32 %v1355, 0.0
        %v1372 = vmax.f32 %v1356, 0.0
        %v1373 = vadd.f32 %v1357, %v1358
        %1374 = vadd.xlane.f32.xlu0 %v1373
        %v1375 = vpop.xlane.xlu0 %1374
        %v1376 = vadd.f32 %v1359, %v1360
        %1377 = vadd.xlane.f32.xlu0 %v1376
        %v1378 = vpop.xlane.xlu0 %1377
        %v1379 = vadd.f32 %v1361, %v1362
        %1380 = vadd.xlane.f32.xlu0 %v1379
        %v1381 = vpop.xlane.xlu0 %1380
        %v1382 = vadd.f32 %v1363, %v1364
        %1383 = vadd.xlane.f32.xlu0 %v1382
        %v1384 = vpop.xlane.xlu0 %1383
        %v1385 = vadd.f32 %v1365, %v1366
        %1386 = vadd.xlane.f32.xlu0 %v1385
        %v1387 = vpop.xlane.xlu0 %1386
        %v1388 = vadd.f32 %v1367, %v1368
        %1389 = vadd.xlane.f32.xlu0 %v1388
        %v1390 = vpop.xlane.xlu0 %1389
        %v1391 = vadd.f32 %v1369, %v1370
        %1392 = vadd.xlane.f32.xlu0 %v1391
        %v1393 = vpop.xlane.xlu0 %1392
        %v1394 = vadd.f32 %v1371, %v1372
        %1395 = vadd.xlane.f32.xlu0 %v1394
        %v1396 = vpop.xlane.xlu0 %1395
        %v1397 = vld [vmem:[#allocation2] sm:$0xff]
        %v1406 = vlaneseq
        %v1407 = vand.u32 %v1406, 127
        %v1408 = vlaneseq
        %v1409 = vshrl.u32 %v1408, 7
        %v1410 = vsub.s32 %v1407, %v1409
        %v1411 = vrot.slane %v904, %v1410
        %v1412 = vlaneseq
        %v1413 = vshrl.u32 %v1412, 7
        %v1414 = vsub.s32 %v1407, %v1413
        %v1415 = vrot.slane %v907, %v1414
        %v1416 = vlaneseq
        %v1417 = vshrl.u32 %v1416, 7
        %v1418 = vsub.s32 %v1407, %v1417
        %v1419 = vrot.slane %v910, %v1418
        %v1420 = vlaneseq
        %v1421 = vshrl.u32 %v1420, 7
        %v1422 = vsub.s32 %v1407, %v1421
        %v1423 = vrot.slane %v913, %v1422
        %v1424 = vlaneseq
        %v1425 = vshrl.u32 %v1424, 7
        %v1426 = vsub.s32 %v1407, %v1425
        %v1427 = vrot.slane %v916, %v1426
        %v1428 = vlaneseq
        %v1429 = vshrl.u32 %v1428, 7
        %v1430 = vsub.s32 %v1407, %v1429
        %v1431 = vrot.slane %v919, %v1430
        %v1432 = vlaneseq
        %v1433 = vshrl.u32 %v1432, 7
        %v1434 = vsub.s32 %v1407, %v1433
        %v1435 = vrot.slane %v922, %v1434
        %v1436 = vlaneseq
        %v1437 = vshrl.u32 %v1436, 7
        %v1438 = vsub.s32 %v1407, %v1437
        %v1439 = vrot.slane %v925, %v1438
        %vm1440 = vcmask 1041409
        %v1441 = vsel %vm1440, %v1415, %v1411
        %vm1442 = vcmask 1042434
        %v1443 = vsel %vm1442, %v1419, %v1441
        %vm1444 = vcmask 1043459
        %v1445 = vsel %vm1444, %v1423, %v1443
        %vm1446 = vcmask 1044484
        %v1447 = vsel %vm1446, %v1427, %v1445
        %vm1448 = vcmask 1045509
        %v1449 = vsel %vm1448, %v1431, %v1447
        %vm1450 = vcmask 1046534
        %v1451 = vsel %vm1450, %v1435, %v1449
        %vm1452 = vcmask 1047559
        %v1453 = vsel %vm1452, %v1439, %v1451
        %v1463 = vadd.s32 %v1407, 4294967288
        %v1464 = vlaneseq
        %v1465 = vshrl.u32 %v1464, 7
        %v1466 = vsub.s32 %v1463, %v1465
        %v1467 = vrot.slane %v1061, %v1466
        %v1468 = vlaneseq
        %v1469 = vshrl.u32 %v1468, 7
        %v1470 = vsub.s32 %v1463, %v1469
        %v1471 = vrot.slane %v1064, %v1470
        %v1472 = vlaneseq
        %v1473 = vshrl.u32 %v1472, 7
        %v1474 = vsub.s32 %v1463, %v1473
        %v1475 = vrot.slane %v1067, %v1474
        %v1476 = vlaneseq
        %v1477 = vshrl.u32 %v1476, 7
        %v1478 = vsub.s32 %v1463, %v1477
        %v1479 = vrot.slane %v1070, %v1478
        %v1480 = vlaneseq
        %v1481 = vshrl.u32 %v1480, 7
        %v1482 = vsub.s32 %v1463, %v1481
        %v1483 = vrot.slane %v1073, %v1482
        %v1484 = vlaneseq
        %v1485 = vshrl.u32 %v1484, 7
        %v1486 = vsub.s32 %v1463, %v1485
        %v1487 = vrot.slane %v1076, %v1486
        %v1488 = vlaneseq
        %v1489 = vshrl.u32 %v1488, 7
        %v1490 = vsub.s32 %v1463, %v1489
        %v1491 = vrot.slane %v1079, %v1490
        %v1492 = vlaneseq
        %v1493 = vshrl.u32 %v1492, 7
        %v1494 = vsub.s32 %v1463, %v1493
        %v1495 = vrot.slane %v1082, %v1494
        %v1496 = vsel %vm1440, %v1471, %v1467
        %v1497 = vsel %vm1442, %v1475, %v1496
        %v1498 = vsel %vm1444, %v1479, %v1497
        %v1499 = vsel %vm1446, %v1483, %v1498
        %v1500 = vsel %vm1448, %v1487, %v1499
        %v1501 = vsel %vm1450, %v1491, %v1500
        %v1502 = vsel %vm1452, %v1495, %v1501
        %v1512 = vadd.s32 %v1407, 4294967280
        %v1513 = vlaneseq
        %v1514 = vshrl.u32 %v1513, 7
        %v1515 = vsub.s32 %v1512, %v1514
        %v1516 = vrot.slane %v1218, %v1515
        %v1517 = vlaneseq
        %v1518 = vshrl.u32 %v1517, 7
        %v1519 = vsub.s32 %v1512, %v1518
        %v1520 = vrot.slane %v1221, %v1519
        %v1521 = vlaneseq
        %v1522 = vshrl.u32 %v1521, 7
        %v1523 = vsub.s32 %v1512, %v1522
        %v1524 = vrot.slane %v1224, %v1523
        %v1525 = vlaneseq
        %v1526 = vshrl.u32 %v1525, 7
        %v1527 = vsub.s32 %v1512, %v1526
        %v1528 = vrot.slane %v1227, %v1527
        %v1529 = vlaneseq
        %v1530 = vshrl.u32 %v1529, 7
        %v1531 = vsub.s32 %v1512, %v1530
        %v1532 = vrot.slane %v1230, %v1531
        %v1533 = vlaneseq
        %v1534 = vshrl.u32 %v1533, 7
        %v1535 = vsub.s32 %v1512, %v1534
        %v1536 = vrot.slane %v1233, %v1535
        %v1537 = vlaneseq
        %v1538 = vshrl.u32 %v1537, 7
        %v1539 = vsub.s32 %v1512, %v1538
        %v1540 = vrot.slane %v1236, %v1539
        %v1541 = vlaneseq
        %v1542 = vshrl.u32 %v1541, 7
        %v1543 = vsub.s32 %v1512, %v1542
        %v1544 = vrot.slane %v1239, %v1543
        %v1545 = vsel %vm1440, %v1520, %v1516
        %v1546 = vsel %vm1442, %v1524, %v1545
        %v1547 = vsel %vm1444, %v1528, %v1546
        %v1548 = vsel %vm1446, %v1532, %v1547
        %v1549 = vsel %vm1448, %v1536, %v1548
        %v1550 = vsel %vm1450, %v1540, %v1549
        %v1551 = vsel %vm1452, %v1544, %v1550
        %v1561 = vadd.s32 %v1407, 4294967272
        %v1562 = vlaneseq
        %v1563 = vshrl.u32 %v1562, 7
        %v1564 = vsub.s32 %v1561, %v1563
        %v1565 = vrot.slane %v1375, %v1564
        %v1566 = vlaneseq
        %v1567 = vshrl.u32 %v1566, 7
        %v1568 = vsub.s32 %v1561, %v1567
        %v1569 = vrot.slane %v1378, %v1568
        %v1570 = vlaneseq
        %v1571 = vshrl.u32 %v1570, 7
        %v1572 = vsub.s32 %v1561, %v1571
        %v1573 = vrot.slane %v1381, %v1572
        %v1574 = vlaneseq
        %v1575 = vshrl.u32 %v1574, 7
        %v1576 = vsub.s32 %v1561, %v1575
        %v1577 = vrot.slane %v1384, %v1576
        %v1578 = vlaneseq
        %v1579 = vshrl.u32 %v1578, 7
        %v1580 = vsub.s32 %v1561, %v1579
        %v1581 = vrot.slane %v1387, %v1580
        %v1582 = vlaneseq
        %v1583 = vshrl.u32 %v1582, 7
        %v1584 = vsub.s32 %v1561, %v1583
        %v1585 = vrot.slane %v1390, %v1584
        %v1586 = vlaneseq
        %v1587 = vshrl.u32 %v1586, 7
        %v1588 = vsub.s32 %v1561, %v1587
        %v1589 = vrot.slane %v1393, %v1588
        %v1590 = vlaneseq
        %v1591 = vshrl.u32 %v1590, 7
        %v1592 = vsub.s32 %v1561, %v1591
        %v1593 = vrot.slane %v1396, %v1592
        %v1594 = vsel %vm1440, %v1569, %v1565
        %v1595 = vsel %vm1442, %v1573, %v1594
        %v1596 = vsel %vm1444, %v1577, %v1595
        %v1597 = vsel %vm1446, %v1581, %v1596
        %v1598 = vsel %vm1448, %v1585, %v1597
        %v1599 = vsel %vm1450, %v1589, %v1598
        %v1600 = vsel %vm1452, %v1593, %v1599
        %vm1602 = vcmask 64512
        %v1603 = vsel %vm1602, %v1453, %v1502
        %vm1604 = vcmask 130048
        %v1605 = vsel %vm1604, %v1603, %v1551
        %vm1606 = vcmask 195584
        %v1607 = vsel %vm1606, %v1605, %v1600
        %v1608 = vadd.f32 %v1397, %v1607
        %vm1609 = vcmask 261120
        %1610 = vst.msk [vmem:[#allocation2] sm:$0xff] %vm1609, %v1608
        // Predicated region
        $region45: #{tpu_custom_call.1} parent=39 // pred_check
          %p1611 = pneg %p352
        $region46: #{tpu_custom_call.1} parent=39 // pred_check_branch
          %1613 = sbr.rel (%p1611) target = $region48
        $region47: #{tpu_custom_call.1} parent=39 // pred_region
          %v1614 = vld [vmem:[#allocation2] sm:$0xff]
          %v1615 = vmul.f32 %v1614, 0.00390625
          %v1616 = vpack.c.bf16 %v1615, %v1615
          %v1617 = vld [vmem:[%s346] sm:$0xff]
          %v1618 = vld [vmem:[%s346 + $0x8] sm:$0xff]
          %v1619 = vld [vmem:[%s346 + $0x10] sm:$0xff]
          %v1620 = vld [vmem:[%s346 + $0x18] sm:$0xff]
          %v1621 = vld [vmem:[%s350] sm:$0x3]
          %v1623 = vlaneseq
          %v1624 = vshrl.u32 %v1623, 7
          %v1625 = vsub.s32 0, %v1624
          %v1626 = vrot.slane %v1621, %v1625
          %v1627 = vlaneseq
          %v1628 = vshrl.u32 %v1627, 7
          %v1629 = vsub.s32 1, %v1628
          %v1630 = vrot.slane %v1621, %v1629
          %v1637 = vunpack.c.l.b16 %v1617
          %v1638 = vunpack.c.h.b16 %v1617
          %v1639 = vunpack.c.l.b16 %v1618
          %v1640 = vunpack.c.h.b16 %v1618
          %v1641 = vunpack.c.l.b16 %v1619
          %v1642 = vunpack.c.h.b16 %v1619
          %v1643 = vunpack.c.l.b16 %v1620
          %v1644 = vunpack.c.h.b16 %v1620
          %v1645 = vpack.c.b16 %v1639, %v1637
          %v1646 = vpack.c.b16 %v1640, %v1638
          %v1647 = vpack.c.b16 %v1643, %v1641
          %v1648 = vpack.c.b16 %v1644, %v1642
          %v1654 = vsel %vm1609, %v1616, 0
          %1656 = vmatprep.subr.bf16.mxu0 0
          %1657 = vmatpush1.bf16.msra.mxu0 0
          %1658 = vmatprep.subr.bf16.mxu0 0
          %1659 = vmatpush1.bf16.msra.mxu0 0
          %1660 = vmatprep.subr.bf16.mxu0 0
          %1661 = vmatpush1.bf16.msra.mxu0 0
          %1662 = vmatprep.subr.bf16.mxu0 0
          %1663 = vmatpush1.bf16.msra.mxu0 0
          %1664 = vmatprep.subr.bf16.mxu0 0
          %1665 = vmatpush1.bf16.msra.mxu0 0
          %1666 = vmatprep.subr.bf16.mxu0 0
          %1667 = vmatpush1.bf16.msra.mxu0 0
          %1668 = vmatprep.subr.bf16.mxu0 %v1648
          %1669 = vmatpush1.bf16.msra.mxu0 %v1647
          %1670 = vmatprep.subr.bf16.mxu0 %v1646
          %1671 = vmatpush1.bf16.msra.mxu0 %v1645
          %1672 = vmatprep.subr.bf16.mxu0 0
          %1673 = vmatpush2.bf16.msra.mxu0 0
          %1674 = vmatprep.subr.bf16.mxu0 0
          %1675 = vmatpush2.bf16.msra.mxu0 0
          %1676 = vmatprep.subr.bf16.mxu0 0
          %1677 = vmatpush2.bf16.msra.mxu0 0
          %1678 = vmatprep.subr.bf16.mxu0 0
          %1679 = vmatpush2.bf16.msra.mxu0 0
          %1680 = vmatprep.subr.bf16.mxu0 0
          %1681 = vmatpush2.bf16.msra.mxu0 0
          %1682 = vmatprep.subr.bf16.mxu0 0
          %1683 = vmatpush2.bf16.msra.mxu0 0
          %1684 = vmatprep.subr.bf16.mxu0 0
          %1685 = vmatpush2.bf16.msra.mxu0 0
          %1686 = vmatprep.subr.bf16.mxu0 0
          %1687 = vmatpush2.bf16.msra.mxu0 0
          %1688 = vmatprep.mubr.bf16.mxu0 0
          %1689 = vmatmul.mubr.bf16.gmra.mxu0 %v1654
          %v1690 = vpop.f32.mrf.mxu0
          %v1691 = vadd.f32 %v1626, %v1690
          %v1692 = vpop.f32.mrf.mxu0
          %v1693 = vadd.f32 %v1630, %v1692
          %v1694 = vpop.f32.mrf.mxu0
          %v1695 = vpop.f32.mrf.mxu0
          %1696 = vdwg.mxu0
          %v1697 = vmax.f32 %v1691, 0.0
          %v1698 = vmax.f32 %v1693, 0.0
          %v1699 = vpack.c.bf16 %v1697, %v1697
          %v1700 = vpack.c.bf16 %v1698, %v1698
          %v1703 = vunpack.c.l.b16 %v1699
          %v1704 = vunpack.c.l.b16 %v1700
          %v1705 = vpack.c.b16 %v1704, %v1703
          %1707 = vst [vmem:[%s317] sm:$0xff] %v1705
        $region48: #{tpu_custom_call.1} parent=39 // pred_fallthru
          _
        %s1708 = sand.u32 %s182, 1
        %s1709 = scalar_lea.sflag [#allocation4], %s1708
        %s1710 = sand.u32 %s182, 1
        %s1711 = smul.addr %s1710, 8
        %s1712 = scalar_lea.vmem [#allocation3], %s1711
        // Predicated region
        $region49: #{tpu_custom_call.1} parent=39 // pred_check
          %p1713 = pneg %p192
        $region50: #{tpu_custom_call.1} parent=39 // pred_check_branch
          %1715 = sbr.rel (%p1713) target = $region52
        $region51: #{tpu_custom_call.1} parent=39 // pred_region
          %s1717 = ssub.s32 128, 128
          %1718 = vsyncadd %s1709, %s1717
          %s1719 = smul.addr %s25, 2
          %s1720 = smul.addr %s24, 2
          %s1721 = sadd.s32 %s1719, %s1720
          %s1722 = smul.addr %s1721, 64
          %s1723 = scalar_lea.hbm %s5, %s1722
          %s1725 = sshll.u32 %s1712, 4
          %s1726 = int_to_ptr.vmem [resolvable:$true] %s1725
          %1728 = dma.vmem_to_hbm [thread:$0]  %s1726, 128, %s1723, %s1709
        $region52: #{tpu_custom_call.1} parent=39 // pred_fallthru
          _
      $region40: #{tpu_custom_call.1} parent=5 // pred_fallthru
        _
      %p1729 = scmp.le.s32.totalorder 2, %s14
      // Predicated region
      $region53: #{tpu_custom_call.1} parent=5 // pred_check
        %p1730 = pneg %p1729
      $region54: #{tpu_custom_call.1} parent=5 // pred_check_branch
        %1732 = sbr.rel (%p1730) target = $region56
      $region55: #{tpu_custom_call.1} parent=5 // pred_region
        %s1733 = ssub.s32 %s14, 2
        // Predicated region
        $region57: #{tpu_custom_call.1} parent=55 // pred_check
          %p1734 = pneg %p198
        $region58: #{tpu_custom_call.1} parent=55 // pred_check_branch
          %1736 = sbr.rel (%p1734) target = $region60
        $region59: #{tpu_custom_call.1} parent=55 // pred_region
          %s1737 = sand.u32 %s183, 1
          %s1738 = scalar_lea.sflag [#allocation4], %s1737
          %s1739 = sand.u32 %s183, 1
          %s1740 = smul.addr %s1739, 8
          %s1741 = scalar_lea.vmem [#allocation3], %s1740
          %1742 = dma.done %s1738, 128
        $region60: #{tpu_custom_call.1} parent=55 // pred_fallthru
          _
      $region56: #{tpu_custom_call.1} parent=5 // pred_fallthru
        _
    $region6: #{tpu_custom_call.1} parent=1 // loop_footer
      %s18 = sadd.s32 1, %s14
    $region7: #{tpu_custom_call.1} parent=1 // loop_footer_branch
      %13 = sbr.rel target = $region3
    $region8: #{tpu_custom_call.1} parent=1 // loop_exit
      _
    %1743 = vsyncpa [#allocation4], 1
    %s1744 = scalar_lea.sflag [#allocation4], 1
    %1745 = vsyncpa %s1744, 1

</llo_original>
